<compile_context>
chip_gen: v7x
topology: tpu7x:2x2x1
jax: 0.10.0
libtpu: 0.0.40
codegen_flags: <defaults>
</compile_context>

<pallas_src>
import jax
import jax.numpy as jnp
from jax.experimental import pallas as pl
from jax.experimental.pallas import tpu as pltpu

_BN_EPS = 1e-5


# ----------------------------------------------------------------------------
# Pallas kernel
# ----------------------------------------------------------------------------
def _make_kernel(bb, Hin, Win, Cin, planes, stride, H1, W1, has_proj):
    Lin = Win * Cin          # packed input lane width  (w*Cin + c)
    Lout = W1 * planes       # packed output lane width (w*planes + c)
    MR = bb * H1             # matmul row count
    span = (H1 - 1) * stride + 1

    def kernel(*refs):
        if has_proj:
            (x_ref, r1_ref, s1_ref, b1_ref, r2_ref, s2_ref, b2_ref,
             rs_ref, ss_ref, bs_ref, out_ref, xp_ref, mp_ref) = refs
        else:
            (x_ref, r1_ref, s1_ref, b1_ref, r2_ref, s2_ref, b2_ref,
             out_ref, xp_ref, mp_ref) = refs

        # ---- stage x (bf16) into the row-padded scratch.  Every scratch row
        # is rewritten each grid step (rows 0 / Hin+1 zero, rows 1..Hin data),
        # so no stale data can leak between grid steps.
        xv = x_ref[...]                                    # (bb, Hin, Lin) f32
        zx = jnp.zeros((bb, 1, Lin), jnp.bfloat16)
        xp_ref[:, 0:1, :] = zx
        xp_ref[:, Hin + 1:Hin + 2, :] = zx
        xp_ref[:, 1:Hin + 1, :] = xv.astype(jnp.bfloat16)
        xp = xp_ref[...]                                   # (bb, Hin+2, Lin) bf16

        def xrows(r0):
            # H-rows r0, r0+stride, ... (H1 of them), flattened to (MR, Lin).
            if stride == 1:
                sl = xp[:, r0:r0 + H1, :]
            else:
                sl = xp[:, r0:r0 + span:stride, :]
            return sl.reshape(MR, Lin)

        # ---- conv1: kx taps + W-padding + W-stride folded into banded r1[ky]
        acc1 = jnp.zeros((MR, Lout), jnp.float32)
        for ky in range(3):
            acc1 = acc1 + jnp.dot(xrows(ky), r1_ref[ky],
                                  preferred_element_type=jnp.float32)

        # ---- bn1 (folded) + relu, f32 ----
        mid = jnp.maximum(acc1 * s1_ref[...] + b1_ref[...], 0.0)

        # ---- stage mid (bf16) into the row-padded conv2 scratch ----
        zm = jnp.zeros((bb, 1, Lout), jnp.bfloat16)
        mp_ref[:, 0:1, :] = zm
        mp_ref[:, H1 + 1:H1 + 2, :] = zm
        mp_ref[:, 1:H1 + 1, :] = mid.reshape(bb, H1, Lout).astype(jnp.bfloat16)
        mp = mp_ref[...]                                   # (bb, H1+2, Lout) bf16

        # ---- conv2 (3x3, stride 1), banded r2[ky] ----
        acc2 = jnp.zeros((MR, Lout), jnp.float32)
        for ky in range(3):
            acc2 = acc2 + jnp.dot(mp[:, ky:ky + H1, :].reshape(MR, Lout),
                                  r2_ref[ky],
                                  preferred_element_type=jnp.float32)

        # ---- bn2 (folded) ----
        out = acc2 * s2_ref[...] + b2_ref[...]

        # ---- shortcut ----
        if has_proj:
            # 1x1 conv, W-stride folded into the banded rs matrix; row stride
            # handled by xrows(1) (original rows ho*stride).
            sc = jnp.dot(xrows(1), rs_ref[...],
                         preferred_element_type=jnp.float32)
            sc = sc * ss_ref[...] + bs_ref[...]
        else:
            sc = xv.reshape(MR, Lout)                      # exact f32 identity

        out_ref[...] = jnp.maximum(out + sc, 0.0).reshape(bb, H1, Lout)

    return kernel


# ----------------------------------------------------------------------------
# Wrapper helpers: BN folding, banded (W-packed) weights, VMEM budgeting
# ----------------------------------------------------------------------------
def _fold_bn(gamma, beta, mean, var, eps=_BN_EPS):
    scale = gamma / jnp.sqrt(var + eps)
    bias = beta - mean * scale
    return scale.astype(jnp.float32), bias.astype(jnp.float32)


def _lane_tile(v, W):
    # per-channel vector (C,) -> (1, W*C) matching packed lane index w*C + c.
    return jnp.tile(v.reshape(1, -1), (1, W)).astype(jnp.float32)


def _banded_conv_weight(w_hwio, Win, Wout, stride):
    # (3,3,Cin,Cout) -> (3, Win*Cin, Wout*Cout) bf16; one banded matrix per ky
    # with the kx taps, W zero-padding (pad=1) and W stride folded in:
    #   R[ky, j*Cin+c, wo*Cout+co] = w[ky, j - wo*stride + 1, c, co]  (if valid)
    Cin, Cout = w_hwio.shape[2], w_hwio.shape[3]
    j = jnp.arange(Win)[:, None]
    wo = jnp.arange(Wout)[None, :]
    kx = j - wo * stride + 1
    valid = ((kx >= 0) & (kx <= 2)).astype(jnp.float32)
    kxc = jnp.clip(kx, 0, 2)
    R = w_hwio[:, kxc] * valid[None, :, :, None, None]   # (3, Win, Wout, Cin, Cout)
    R = jnp.transpose(R, (0, 1, 3, 2, 4)).reshape(3, Win * Cin, Wout * Cout)
    return R.astype(jnp.bfloat16)


def _banded_proj_weight(ws_hwio, Win, Wout, stride):
    # 1x1 projection: R[j*Cin+c, wo*Cout+co] = ws[c,co] iff j == wo*stride.
    Cin, Cout = ws_hwio.shape[2], ws_hwio.shape[3]
    j = jnp.arange(Win)[:, None]
    wo = jnp.arange(Wout)[None, :]
    sel = (j == wo * stride).astype(jnp.float32)
    R = sel[:, :, None, None] * ws_hwio[0, 0][None, None, :, :]
    R = jnp.transpose(R, (0, 2, 1, 3)).reshape(Win * Cin, Wout * Cout)
    return R.astype(jnp.bfloat16)


def _tiled_bytes(shape, dtype):
    # VMEM footprint of one buffer: last dim padded to 128 lanes, 2nd-to-last
    # to the dtype's sublane tile (8 for 4B, 16 for 2B, 32 for 1B).
    itemsize = jnp.dtype(dtype).itemsize
    sub = {4: 8, 2: 16, 1: 32}.get(itemsize, 8)
    s = list(shape) if len(shape) >= 2 else [1] + list(shape)
    s[-1] = -(-s[-1] // 128) * 128
    s[-2] = -(-s[-2] // sub) * sub
    n = 1
    for d in s:
        n *= d
    return n * itemsize


def _pick_batch_block(N, bytes_fn, budget):
    # Largest divisor of N that fits the (tiled, double-buffered) VMEM budget
    # while keeping grid >= min(N, 4): >=2 steps for v7x's two TensorCores,
    # >=4 so the auto-pipeline can overlap the input DMA with compute.
    min_grid = min(N, 4)
    best = 1
    for d in range(1, N + 1):
        if N % d == 0 and N // d >= min_grid and bytes_fn(d) <= budget:
            best = d
    return best


# ----------------------------------------------------------------------------
# Forward (NHWC chain interface + NCHW module-compatible wrapper)
# ----------------------------------------------------------------------------
def basic_block_forward_nhwc(x_nhwc, params, stride):
    x = x_nhwc.astype(jnp.float32)
    N, Hin, Win, Cin = x.shape
    planes = params["w1"].shape[-1]
    has_proj = (stride != 1) or (Cin != planes)
    H1 = (Hin - 1) // stride + 1
    W1 = (Win - 1) // stride + 1
    Lin, Lout = Win * Cin, W1 * planes

    # Fold BN; build banded, bf16, W-packed conv weights once per call.
    s1, b1 = _fold_bn(*params["bn1"])
    s2, b2 = _fold_bn(*params["bn2"])
    r1 = _banded_conv_weight(params["w1"], Win, W1, stride)   # (3, Lin, Lout)
    r2 = _banded_conv_weight(params["w2"], W1, W1, 1)         # (3, Lout, Lout)

    args = [x.reshape(N, Hin, Lin),                            # free packing
            r1, _lane_tile(s1, W1), _lane_tile(b1, W1),
            r2, _lane_tile(s2, W1), _lane_tile(b2, W1)]
    if has_proj:
        ss, bs = _fold_bn(*params["bns"])
        rs = _banded_proj_weight(params["ws"], Win, W1, stride)
        args += [rs, _lane_tile(ss, W1), _lane_tile(bs, W1)]

    def vmem_bytes(bb):
        total = 0
        for a in args[1:]:                                     # weights/biases
            total += 2 * _tiled_bytes(a.shape, a.dtype)
        total += 2 * _tiled_bytes((bb, Hin, Lin), jnp.float32)   # x block x2
        total += 2 * _tiled_bytes((bb, H1, Lout), jnp.float32)   # out block x2
        total += _tiled_bytes((bb, Hin + 2, Lin), jnp.bfloat16)  # xp scratch
        total += _tiled_bytes((bb, H1 + 2, Lout), jnp.bfloat16)  # mp scratch
        total += 6 * _tiled_bytes((bb * H1, Lout), jnp.float32)  # live f32 tmps
        return total

    bb = _pick_batch_block(N, vmem_bytes, budget=24 * 1024 * 1024)
    need = vmem_bytes(bb)
    vmem_limit = int(min(48 << 20, max(32 << 20, 2 * need)))   # safe on v7x 64MiB

    in_specs = [
        pl.BlockSpec((bb, Hin, Lin), lambda n: (n, 0, 0)),
        pl.BlockSpec((3, Lin, Lout), lambda n: (0, 0, 0)),
        pl.BlockSpec((1, Lout), lambda n: (0, 0)),
        pl.BlockSpec((1, Lout), lambda n: (0, 0)),
        pl.BlockSpec((3, Lout, Lout), lambda n: (0, 0, 0)),
        pl.BlockSpec((1, Lout), lambda n: (0, 0)),
        pl.BlockSpec((1, Lout), lambda n: (0, 0)),
    ]
    if has_proj:
        in_specs += [
            pl.BlockSpec((Lin, Lout), lambda n: (0, 0)),
            pl.BlockSpec((1, Lout), lambda n: (0, 0)),
            pl.BlockSpec((1, Lout), lambda n: (0, 0)),
        ]

    kernel = _make_kernel(bb, Hin, Win, Cin, planes, stride, H1, W1, has_proj)

    out = pl.pallas_call(
        kernel,
        out_shape=jax.ShapeDtypeStruct((N, H1, Lout), jnp.float32),
        grid_spec=pltpu.PrefetchScalarGridSpec(
            num_scalar_prefetch=0,
            grid=(N // bb,),
            in_specs=in_specs,
            out_specs=pl.BlockSpec((bb, H1, Lout), lambda n: (n, 0, 0)),
            scratch_shapes=[
                pltpu.VMEM((bb, Hin + 2, Lin), jnp.bfloat16),   # padded x
                pltpu.VMEM((bb, H1 + 2, Lout), jnp.bfloat16),   # padded mid
            ],
        ),
        compiler_params=pltpu.CompilerParams(
            dimension_semantics=("parallel",),
            vmem_limit_bytes=vmem_limit),
    )(*args)

    return out.reshape(N, H1, W1, planes)                      # free unpacking


def basic_block_forward(x_nchw, params, stride):
    # PyTorch-compatible NCHW interface (transpose only at the boundary).
    x_nhwc = jnp.transpose(x_nchw, (0, 2, 3, 1))
    y = basic_block_forward_nhwc(x_nhwc, params, stride)
    return jnp.transpose(y, (0, 3, 1, 2))


# ----------------------------------------------------------------------------
# Pure-JAX reference (for correctness check)
# ----------------------------------------------------------------------------
def _ref_bn(x, gamma, beta, mean, var, eps=_BN_EPS):
    return (x - mean) / jnp.sqrt(var + eps) * gamma + beta


def basic_block_reference(x_nchw, params, stride):
    x = jnp.transpose(x_nchw, (0, 2, 3, 1)).astype(jnp.float32)
    Cin = x.shape[-1]
    planes = params["w1"].shape[-1]

    def conv(inp, w, s, pad):
        return jax.lax.conv_general_dilated(
            inp, w, (s, s), ((pad, pad), (pad, pad)),
            dimension_numbers=("NHWC", "HWIO", "NHWC"))

    out = conv(x, params["w1"], stride, 1)
    out = jax.nn.relu(_ref_bn(out, *params["bn1"]))
    out = conv(out, params["w2"], 1, 1)
    out = _ref_bn(out, *params["bn2"])
    if stride != 1 or Cin != planes:
        sc = _ref_bn(conv(x, params["ws"], stride, 0), *params["bns"])
    else:
        sc = x
    return jnp.transpose(jax.nn.relu(out + sc), (0, 3, 1, 2))


# ----------------------------------------------------------------------------
# Deterministic parameter init
# ----------------------------------------------------------------------------
def _bn_init(key, c):
    k1, k2, k3, k4 = jax.random.split(key, 4)
    gamma = jax.random.uniform(k1, (c,), jnp.float32, 0.5, 1.5)
    beta = 0.1 * jax.random.normal(k2, (c,), jnp.float32)
    mean = 0.1 * jax.random.normal(k3, (c,), jnp.float32)
    var = jax.random.uniform(k4, (c,), jnp.float32, 0.5, 1.5)
    return (gamma, beta, mean, var)


def init_basic_block(key, in_planes, planes, stride):
    ks = jax.random.split(key, 6)
    p = {
        "w1": 0.1 * jax.random.normal(ks[0], (3, 3, in_planes, planes), jnp.float32),
        "bn1": _bn_init(ks[1], planes),
        "w2": 0.1 * jax.random.normal(ks[2], (3, 3, planes, planes), jnp.float32),
        "bn2": _bn_init(ks[3], planes),
    }
    if stride != 1 or in_planes != planes:
        p["ws"] = 0.1 * jax.random.normal(ks[4], (1, 1, in_planes, planes), jnp.float32)
        p["bns"] = _bn_init(ks[5], planes)
    return p


# ----------------------------------------------------------------------------
if __name__ == "__main__":
    key = jax.random.PRNGKey(0)
    kx, kp1, kp2 = jax.random.split(key, 3)

    # NCHW input, PyTorch convention
    x = jax.random.normal(kx, (2, 4, 16, 16), jnp.float32)

    # Tolerances are loosened vs. the pure-f32 reference because the MXU is
    # fed bf16 operands (f32 accumulation); logic errors would be O(1).
    RTOL, ATOL = 5e-2, 5e-2

    # Block 1: projection shortcut (in_planes=4 != planes=8), stride=1
    # Block 2: identity shortcut (in_planes=planes=8, stride=1)
    params1 = init_basic_block(kp1, in_planes=4, planes=8, stride=1)
    params2 = init_basic_block(kp2, in_planes=8, planes=8, stride=1)

    # Chain the two blocks in NHWC: one transpose into and one out of the
    # chain (no per-block NCHW<->NHWC HBM round trips).
    x_nhwc = jnp.transpose(x, (0, 2, 3, 1))
    y1_nhwc = jax.block_until_ready(basic_block_forward_nhwc(x_nhwc, params1, 1))
    y2_nhwc = jax.block_until_ready(basic_block_forward_nhwc(y1_nhwc, params2, 1))
    y1 = jnp.transpose(y1_nhwc, (0, 3, 1, 2))
    y2 = jnp.transpose(y2_nhwc, (0, 3, 1, 2))

    r1 = basic_block_reference(x, params1, 1)
    r2 = basic_block_reference(y1, params2, 1)      # per-block comparison
    assert y1.shape == (2, 8, 16, 16)
    assert y2.shape == (2, 8, 16, 16)
    assert jnp.allclose(y1, r1, rtol=RTOL, atol=ATOL), "block1 mismatch"
    assert jnp.allclose(y2, r2, rtol=RTOL, atol=ATOL), "block2 mismatch"

    # Also exercise the module-compatible NCHW wrapper once.
    y1b = jax.block_until_ready(basic_block_forward(x, params1, 1))
    assert jnp.allclose(y1b, r1, rtol=RTOL, atol=ATOL), "nchw wrapper mismatch"

    print("KERNEL_OK")
</pallas_src>

<mosaic_0001>
module attributes {stable_mosaic.version = 11 : i64} {
  func.func @kernel(%arg0: i32, %arg1: memref<1x16x64xf32, #tpu.memory_space<vmem>>, %arg2: memref<3x64x128xbf16, #tpu.memory_space<vmem>>, %arg3: memref<1x128xf32, #tpu.memory_space<vmem>>, %arg4: memref<1x128xf32, #tpu.memory_space<vmem>>, %arg5: memref<3x128x128xbf16, #tpu.memory_space<vmem>>, %arg6: memref<1x128xf32, #tpu.memory_space<vmem>>, %arg7: memref<1x128xf32, #tpu.memory_space<vmem>>, %arg8: memref<64x128xbf16, #tpu.memory_space<vmem>>, %arg9: memref<1x128xf32, #tpu.memory_space<vmem>>, %arg10: memref<1x128xf32, #tpu.memory_space<vmem>>, %arg11: memref<1x16x128xf32, #tpu.memory_space<vmem>>, %arg12: memref<1x18x64xbf16, #tpu.memory_space<vmem>>, %arg13: memref<1x18x128xbf16, #tpu.memory_space<vmem>>) attributes {dimension_semantics = [#tpu.dimension_semantics<parallel>], iteration_bounds = array<i64: 2>, scalar_prefetch = 0 : i64, scratch_operands = 2 : i64, tpu.core_type = #tpu.core_type<tc>, window_params = [{transform_indices = @transform_0, window_bounds = array<i64: 1, 16, 64>}, {pipeline_mode = #tpu.pipeline_mode<synchronous>, transform_indices = @transform_1, window_bounds = array<i64: 3, 64, 128>}, {pipeline_mode = #tpu.pipeline_mode<synchronous>, transform_indices = @transform_2, window_bounds = array<i64: 1, 128>}, {pipeline_mode = #tpu.pipeline_mode<synchronous>, transform_indices = @transform_3, window_bounds = array<i64: 1, 128>}, {pipeline_mode = #tpu.pipeline_mode<synchronous>, transform_indices = @transform_4, window_bounds = array<i64: 3, 128, 128>}, {pipeline_mode = #tpu.pipeline_mode<synchronous>, transform_indices = @transform_5, window_bounds = array<i64: 1, 128>}, {pipeline_mode = #tpu.pipeline_mode<synchronous>, transform_indices = @transform_6, window_bounds = array<i64: 1, 128>}, {pipeline_mode = #tpu.pipeline_mode<synchronous>, transform_indices = @transform_7, window_bounds = array<i64: 64, 128>}, {pipeline_mode = #tpu.pipeline_mode<synchronous>, transform_indices = @transform_8, window_bounds = array<i64: 1, 128>}, {pipeline_mode = #tpu.pipeline_mode<synchronous>, transform_indices = @transform_9, window_bounds = array<i64: 1, 128>}, {transform_indices = @transform_10, window_bounds = array<i64: 1, 16, 128>}]} {
    %c0 = arith.constant 0 : index
    %c0_0 = arith.constant 0 : index
    %c0_1 = arith.constant 0 : index
    %0 = vector.load %arg1[%c0, %c0_0, %c0_1] : memref<1x16x64xf32, #tpu.memory_space<vmem>>, vector<1x16x64xf32>
    %cst = arith.constant 0.000000e+00 : bf16
    %1 = vector.broadcast %cst : bf16 to vector<1x1x64xbf16>
    %c0_2 = arith.constant 0 : index
    %c0_3 = arith.constant 0 : index
    %c0_4 = arith.constant 0 : index
    %2 = vector.load %arg12[%c0_2, %c0_3, %c0_4] : memref<1x18x64xbf16, #tpu.memory_space<vmem>>, vector<1x1x64xbf16>
    tpu.vector_store %arg12[%c0_2, %c0_3, %c0_4], %1 {strides = array<i32>} : memref<1x18x64xbf16, #tpu.memory_space<vmem>>, vector<1x1x64xbf16>,
    %c0_5 = arith.constant 0 : index
    %c17 = arith.constant 17 : index
    %c0_6 = arith.constant 0 : index
    %3 = vector.load %arg12[%c0_5, %c17, %c0_6] : memref<1x18x64xbf16, #tpu.memory_space<vmem>>, vector<1x1x64xbf16>
    tpu.vector_store %arg12[%c0_5, %c17, %c0_6], %1 {strides = array<i32>} : memref<1x18x64xbf16, #tpu.memory_space<vmem>>, vector<1x1x64xbf16>,
    %4 = arith.truncf %0 : vector<1x16x64xf32> to vector<1x16x64xbf16>
    %c0_7 = arith.constant 0 : index
    %c1 = arith.constant 1 : index
    %c0_8 = arith.constant 0 : index
    %5 = vector.load %arg12[%c0_7, %c1, %c0_8] : memref<1x18x64xbf16, #tpu.memory_space<vmem>>, vector<1x16x64xbf16>
    tpu.vector_store %arg12[%c0_7, %c1, %c0_8], %4 {strides = array<i32>} : memref<1x18x64xbf16, #tpu.memory_space<vmem>>, vector<1x16x64xbf16>,
    %c0_9 = arith.constant 0 : index
    %c0_10 = arith.constant 0 : index
    %c0_11 = arith.constant 0 : index
    %6 = vector.load %arg12[%c0_9, %c0_10, %c0_11] : memref<1x18x64xbf16, #tpu.memory_space<vmem>>, vector<1x18x64xbf16>
    %cst_12 = arith.constant 0.000000e+00 : f32
    %7 = vector.broadcast %cst_12 : f32 to vector<16x128xf32>
    %8 = vector.extract_strided_slice %6 {offsets = [0, 0, 0], sizes = [1, 16, 64], strides = [1, 1, 1]} : vector<1x18x64xbf16> to vector<1x16x64xbf16>
    %9 = vector.shape_cast %8 : vector<1x16x64xbf16> to vector<16x64xbf16>
    %c0_13 = arith.constant 0 : index
    %c0_14 = arith.constant 0 : index
    %c0_15 = arith.constant 0 : index
    %10 = vector.load %arg2[%c0_13, %c0_14, %c0_15] : memref<3x64x128xbf16, #tpu.memory_space<vmem>>, vector<1x64x128xbf16>
    %11 = vector.shape_cast %10 : vector<1x64x128xbf16> to vector<64x128xbf16>
    %cst_16 = arith.constant dense<0.000000e+00> : vector<16x128xf32>
    %12 = tpu.matmul %9, %11, %cst_16 {dimension_numbers = #tpu.dot_dimension_numbers<[1], [0], [0], [1], [0, 0, 1, 1], [], []>} : vector<16x64xbf16>, vector<64x128xbf16>, vector<16x128xf32> -> vector<16x128xf32>
    %13 = arith.addf %7, %12 : vector<16x128xf32>
    %14 = vector.extract_strided_slice %6 {offsets = [0, 1, 0], sizes = [1, 16, 64], strides = [1, 1, 1]} : vector<1x18x64xbf16> to vector<1x16x64xbf16>
    %15 = vector.shape_cast %14 : vector<1x16x64xbf16> to vector<16x64xbf16>
    %c1_17 = arith.constant 1 : index
    %c0_18 = arith.constant 0 : index
    %c0_19 = arith.constant 0 : index
    %16 = vector.load %arg2[%c1_17, %c0_18, %c0_19] : memref<3x64x128xbf16, #tpu.memory_space<vmem>>, vector<1x64x128xbf16>
    %17 = vector.shape_cast %16 : vector<1x64x128xbf16> to vector<64x128xbf16>
    %cst_20 = arith.constant dense<0.000000e+00> : vector<16x128xf32>
    %18 = tpu.matmul %15, %17, %cst_20 {dimension_numbers = #tpu.dot_dimension_numbers<[1], [0], [0], [1], [0, 0, 1, 1], [], []>} : vector<16x64xbf16>, vector<64x128xbf16>, vector<16x128xf32> -> vector<16x128xf32>
    %19 = arith.addf %13, %18 : vector<16x128xf32>
    %20 = vector.extract_strided_slice %6 {offsets = [0, 2, 0], sizes = [1, 16, 64], strides = [1, 1, 1]} : vector<1x18x64xbf16> to vector<1x16x64xbf16>
    %21 = vector.shape_cast %20 : vector<1x16x64xbf16> to vector<16x64xbf16>
    %c2 = arith.constant 2 : index
    %c0_21 = arith.constant 0 : index
    %c0_22 = arith.constant 0 : index
    %22 = vector.load %arg2[%c2, %c0_21, %c0_22] : memref<3x64x128xbf16, #tpu.memory_space<vmem>>, vector<1x64x128xbf16>
    %23 = vector.shape_cast %22 : vector<1x64x128xbf16> to vector<64x128xbf16>
    %cst_23 = arith.constant dense<0.000000e+00> : vector<16x128xf32>
    %24 = tpu.matmul %21, %23, %cst_23 {dimension_numbers = #tpu.dot_dimension_numbers<[1], [0], [0], [1], [0, 0, 1, 1], [], []>} : vector<16x64xbf16>, vector<64x128xbf16>, vector<16x128xf32> -> vector<16x128xf32>
    %25 = arith.addf %19, %24 : vector<16x128xf32>
    %c0_24 = arith.constant 0 : index
    %c0_25 = arith.constant 0 : index
    %26 = vector.load %arg3[%c0_24, %c0_25] : memref<1x128xf32, #tpu.memory_space<vmem>>, vector<1x128xf32>
    %27 = vector.broadcast %26 : vector<1x128xf32> to vector<16x128xf32>
    %28 = arith.mulf %25, %27 : vector<16x128xf32>
    %c0_26 = arith.constant 0 : index
    %c0_27 = arith.constant 0 : index
    %29 = vector.load %arg4[%c0_26, %c0_27] : memref<1x128xf32, #tpu.memory_space<vmem>>, vector<1x128xf32>
    %30 = vector.broadcast %29 : vector<1x128xf32> to vector<16x128xf32>
    %31 = arith.addf %28, %30 : vector<16x128xf32>
    %cst_28 = arith.constant 0.000000e+00 : f32
    %32 = vector.broadcast %cst_28 : f32 to vector<16x128xf32>
    %33 = arith.maximumf %31, %32 : vector<16x128xf32>
    %cst_29 = arith.constant 0.000000e+00 : bf16
    %34 = vector.broadcast %cst_29 : bf16 to vector<1x1x128xbf16>
    %c0_30 = arith.constant 0 : index
    %c0_31 = arith.constant 0 : index
    %c0_32 = arith.constant 0 : index
    %35 = vector.load %arg13[%c0_30, %c0_31, %c0_32] : memref<1x18x128xbf16, #tpu.memory_space<vmem>>, vector<1x1x128xbf16>
    tpu.vector_store %arg13[%c0_30, %c0_31, %c0_32], %34 {strides = array<i32>} : memref<1x18x128xbf16, #tpu.memory_space<vmem>>, vector<1x1x128xbf16>,
    %c0_33 = arith.constant 0 : index
    %c17_34 = arith.constant 17 : index
    %c0_35 = arith.constant 0 : index
    %36 = vector.load %arg13[%c0_33, %c17_34, %c0_35] : memref<1x18x128xbf16, #tpu.memory_space<vmem>>, vector<1x1x128xbf16>
    tpu.vector_store %arg13[%c0_33, %c17_34, %c0_35], %34 {strides = array<i32>} : memref<1x18x128xbf16, #tpu.memory_space<vmem>>, vector<1x1x128xbf16>,
    %37 = vector.shape_cast %33 : vector<16x128xf32> to vector<1x16x128xf32>
    %38 = arith.truncf %37 : vector<1x16x128xf32> to vector<1x16x128xbf16>
    %c0_36 = arith.constant 0 : index
    %c1_37 = arith.constant 1 : index
    %c0_38 = arith.constant 0 : index
    %39 = vector.load %arg13[%c0_36, %c1_37, %c0_38] : memref<1x18x128xbf16, #tpu.memory_space<vmem>>, vector<1x16x128xbf16>
    tpu.vector_store %arg13[%c0_36, %c1_37, %c0_38], %38 {strides = array<i32>} : memref<1x18x128xbf16, #tpu.memory_space<vmem>>, vector<1x16x128xbf16>,
    %c0_39 = arith.constant 0 : index
    %c0_40 = arith.constant 0 : index
    %c0_41 = arith.constant 0 : index
    %40 = vector.load %arg13[%c0_39, %c0_40, %c0_41] : memref<1x18x128xbf16, #tpu.memory_space<vmem>>, vector<1x18x128xbf16>
    %cst_42 = arith.constant 0.000000e+00 : f32
    %41 = vector.broadcast %cst_42 : f32 to vector<16x128xf32>
    %42 = vector.extract_strided_slice %40 {offsets = [0, 0, 0], sizes = [1, 16, 128], strides = [1, 1, 1]} : vector<1x18x128xbf16> to vector<1x16x128xbf16>
    %43 = vector.shape_cast %42 : vector<1x16x128xbf16> to vector<16x128xbf16>
    %c0_43 = arith.constant 0 : index
    %c0_44 = arith.constant 0 : index
    %c0_45 = arith.constant 0 : index
    %44 = vector.load %arg5[%c0_43, %c0_44, %c0_45] : memref<3x128x128xbf16, #tpu.memory_space<vmem>>, vector<1x128x128xbf16>
    %45 = vector.shape_cast %44 : vector<1x128x128xbf16> to vector<128x128xbf16>
    %cst_46 = arith.constant dense<0.000000e+00> : vector<16x128xf32>
    %46 = tpu.matmul %43, %45, %cst_46 {dimension_numbers = #tpu.dot_dimension_numbers<[1], [0], [0], [1], [0, 0, 1, 1], [], []>} : vector<16x128xbf16>, vector<128x128xbf16>, vector<16x128xf32> -> vector<16x128xf32>
    %47 = arith.addf %41, %46 : vector<16x128xf32>
    %48 = vector.extract_strided_slice %40 {offsets = [0, 1, 0], sizes = [1, 16, 128], strides = [1, 1, 1]} : vector<1x18x128xbf16> to vector<1x16x128xbf16>
    %49 = vector.shape_cast %48 : vector<1x16x128xbf16> to vector<16x128xbf16>
    %c1_47 = arith.constant 1 : index
    %c0_48 = arith.constant 0 : index
    %c0_49 = arith.constant 0 : index
    %50 = vector.load %arg5[%c1_47, %c0_48, %c0_49] : memref<3x128x128xbf16, #tpu.memory_space<vmem>>, vector<1x128x128xbf16>
    %51 = vector.shape_cast %50 : vector<1x128x128xbf16> to vector<128x128xbf16>
    %cst_50 = arith.constant dense<0.000000e+00> : vector<16x128xf32>
    %52 = tpu.matmul %49, %51, %cst_50 {dimension_numbers = #tpu.dot_dimension_numbers<[1], [0], [0], [1], [0, 0, 1, 1], [], []>} : vector<16x128xbf16>, vector<128x128xbf16>, vector<16x128xf32> -> vector<16x128xf32>
    %53 = arith.addf %47, %52 : vector<16x128xf32>
    %54 = vector.extract_strided_slice %40 {offsets = [0, 2, 0], sizes = [1, 16, 128], strides = [1, 1, 1]} : vector<1x18x128xbf16> to vector<1x16x128xbf16>
    %55 = vector.shape_cast %54 : vector<1x16x128xbf16> to vector<16x128xbf16>
    %c2_51 = arith.constant 2 : index
    %c0_52 = arith.constant 0 : index
    %c0_53 = arith.constant 0 : index
    %56 = vector.load %arg5[%c2_51, %c0_52, %c0_53] : memref<3x128x128xbf16, #tpu.memory_space<vmem>>, vector<1x128x128xbf16>
    %57 = vector.shape_cast %56 : vector<1x128x128xbf16> to vector<128x128xbf16>
    %cst_54 = arith.constant dense<0.000000e+00> : vector<16x128xf32>
    %58 = tpu.matmul %55, %57, %cst_54 {dimension_numbers = #tpu.dot_dimension_numbers<[1], [0], [0], [1], [0, 0, 1, 1], [], []>} : vector<16x128xbf16>, vector<128x128xbf16>, vector<16x128xf32> -> vector<16x128xf32>
    %59 = arith.addf %53, %58 : vector<16x128xf32>
    %c0_55 = arith.constant 0 : index
    %c0_56 = arith.constant 0 : index
    %60 = vector.load %arg6[%c0_55, %c0_56] : memref<1x128xf32, #tpu.memory_space<vmem>>, vector<1x128xf32>
    %61 = vector.broadcast %60 : vector<1x128xf32> to vector<16x128xf32>
    %62 = arith.mulf %59, %61 : vector<16x128xf32>
    %c0_57 = arith.constant 0 : index
    %c0_58 = arith.constant 0 : index
    %63 = vector.load %arg7[%c0_57, %c0_58] : memref<1x128xf32, #tpu.memory_space<vmem>>, vector<1x128xf32>
    %64 = vector.broadcast %63 : vector<1x128xf32> to vector<16x128xf32>
    %65 = arith.addf %62, %64 : vector<16x128xf32>
    %66 = vector.extract_strided_slice %6 {offsets = [0, 1, 0], sizes = [1, 16, 64], strides = [1, 1, 1]} : vector<1x18x64xbf16> to vector<1x16x64xbf16>
    %67 = vector.shape_cast %66 : vector<1x16x64xbf16> to vector<16x64xbf16>
    %c0_59 = arith.constant 0 : index
    %c0_60 = arith.constant 0 : index
    %68 = vector.load %arg8[%c0_59, %c0_60] : memref<64x128xbf16, #tpu.memory_space<vmem>>, vector<64x128xbf16>
    %cst_61 = arith.constant dense<0.000000e+00> : vector<16x128xf32>
    %69 = tpu.matmul %67, %68, %cst_61 {dimension_numbers = #tpu.dot_dimension_numbers<[1], [0], [0], [1], [0, 0, 1, 1], [], []>} : vector<16x64xbf16>, vector<64x128xbf16>, vector<16x128xf32> -> vector<16x128xf32>
    %c0_62 = arith.constant 0 : index
    %c0_63 = arith.constant 0 : index
    %70 = vector.load %arg9[%c0_62, %c0_63] : memref<1x128xf32, #tpu.memory_space<vmem>>, vector<1x128xf32>
    %71 = vector.broadcast %70 : vector<1x128xf32> to vector<16x128xf32>
    %72 = arith.mulf %69, %71 : vector<16x128xf32>
    %c0_64 = arith.constant 0 : index
    %c0_65 = arith.constant 0 : index
    %73 = vector.load %arg10[%c0_64, %c0_65] : memref<1x128xf32, #tpu.memory_space<vmem>>, vector<1x128xf32>
    %74 = vector.broadcast %73 : vector<1x128xf32> to vector<16x128xf32>
    %75 = arith.addf %72, %74 : vector<16x128xf32>
    %76 = arith.addf %65, %75 : vector<16x128xf32>
    %cst_66 = arith.constant 0.000000e+00 : f32
    %77 = vector.broadcast %cst_66 : f32 to vector<16x128xf32>
    %78 = arith.maximumf %76, %77 : vector<16x128xf32>
    %79 = vector.shape_cast %78 : vector<16x128xf32> to vector<1x16x128xf32>
    %c0_67 = arith.constant 0 : index
    %c0_68 = arith.constant 0 : index
    %c0_69 = arith.constant 0 : index
    %80 = vector.load %arg11[%c0_67, %c0_68, %c0_69] : memref<1x16x128xf32, #tpu.memory_space<vmem>>, vector<1x16x128xf32>
    tpu.vector_store %arg11[%c0_67, %c0_68, %c0_69], %79 {strides = array<i32>} : memref<1x16x128xf32, #tpu.memory_space<vmem>>, vector<1x16x128xf32>,
    return
  }
  func.func @transform_0(%arg0: i32) -> (i32, i32, i32) {
    %c0_i32 = arith.constant 0 : i32
    %c0_i32_0 = arith.constant 0 : i32
    %c0_i32_1 = arith.constant 0 : i32
    return %arg0, %c0_i32, %c0_i32_0 : i32, i32, i32
  }
  func.func @transform_1(%arg0: i32) -> (i32, i32, i32) {
    %c0_i32 = arith.constant 0 : i32
    %c0_i32_0 = arith.constant 0 : i32
    %c0_i32_1 = arith.constant 0 : i32
    %c0_i32_2 = arith.constant 0 : i32
    return %c0_i32, %c0_i32_0, %c0_i32_1 : i32, i32, i32
  }
  func.func @transform_2(%arg0: i32) -> (i32, i32) {
    %c0_i32 = arith.constant 0 : i32
    %c0_i32_0 = arith.constant 0 : i32
    %c0_i32_1 = arith.constant 0 : i32
    return %c0_i32, %c0_i32_0 : i32, i32
  }
  func.func @transform_3(%arg0: i32) -> (i32, i32) {
    %c0_i32 = arith.constant 0 : i32
    %c0_i32_0 = arith.constant 0 : i32
    %c0_i32_1 = arith.constant 0 : i32
    return %c0_i32, %c0_i32_0 : i32, i32
  }
  func.func @transform_4(%arg0: i32) -> (i32, i32, i32) {
    %c0_i32 = arith.constant 0 : i32
    %c0_i32_0 = arith.constant 0 : i32
    %c0_i32_1 = arith.constant 0 : i32
    %c0_i32_2 = arith.constant 0 : i32
    return %c0_i32, %c0_i32_0, %c0_i32_1 : i32, i32, i32
  }
  func.func @transform_5(%arg0: i32) -> (i32, i32) {
    %c0_i32 = arith.constant 0 : i32
    %c0_i32_0 = arith.constant 0 : i32
    %c0_i32_1 = arith.constant 0 : i32
    return %c0_i32, %c0_i32_0 : i32, i32
  }
  func.func @transform_6(%arg0: i32) -> (i32, i32) {
    %c0_i32 = arith.constant 0 : i32
    %c0_i32_0 = arith.constant 0 : i32
    %c0_i32_1 = arith.constant 0 : i32
    return %c0_i32, %c0_i32_0 : i32, i32
  }
  func.func @transform_7(%arg0: i32) -> (i32, i32) {
    %c0_i32 = arith.constant 0 : i32
    %c0_i32_0 = arith.constant 0 : i32
    %c0_i32_1 = arith.constant 0 : i32
    return %c0_i32, %c0_i32_0 : i32, i32
  }
  func.func @transform_8(%arg0: i32) -> (i32, i32) {
    %c0_i32 = arith.constant 0 : i32
    %c0_i32_0 = arith.constant 0 : i32
    %c0_i32_1 = arith.constant 0 : i32
    return %c0_i32, %c0_i32_0 : i32, i32
  }
  func.func @transform_9(%arg0: i32) -> (i32, i32) {
    %c0_i32 = arith.constant 0 : i32
    %c0_i32_0 = arith.constant 0 : i32
    %c0_i32_1 = arith.constant 0 : i32
    return %c0_i32, %c0_i32_0 : i32, i32
  }
  func.func @transform_10(%arg0: i32) -> (i32, i32, i32) {
    %c0_i32 = arith.constant 0 : i32
    %c0_i32_0 = arith.constant 0 : i32
    %c0_i32_1 = arith.constant 0 : i32
    return %arg0, %c0_i32, %c0_i32_0 : i32, i32, i32
  }
}

</mosaic_0001>

<llo_original>
// kernel: tpu_custom_call.1
$region0: #{tpu_custom_call.1}
  #allocation0 [shape = 'u32[]', space=smem, size = 0x4, offset = 0x4, fixed_abs, tag = 'smem constant byte address 0x4 - core index']
  #allocation1 [shape = 'u32[144,128]{1,0:T(1,128)}', space=vmem, size = 0x12000, scoped, tag = 'internal scratch']
  #allocation2 [shape = 'bf16[1,18,64]{2,1,0:T(8,128)(2,1)}', space=vmem, size = 0x1800, scoped, tag = 'scratch operand']
  #allocation3 [shape = 'bf16[1,18,128]{2,1,0:T(8,128)(2,1)}', space=vmem, size = 0x1800, scoped, tag = 'scratch operand']
  %s0 = inlined_call_operand.hbm [shape: f32[2,16,64], index: 0, kind: input, shape index: {}]
  %s1 = inlined_call_operand.hbm [shape: bf16[3,64,128], index: 1, kind: input, shape index: {}]
  %s2 = inlined_call_operand.vmem [shape: f32[1,128], index: 2, kind: input, shape index: {}]
  %s3 = inlined_call_operand.vmem [shape: f32[1,128], index: 3, kind: input, shape index: {}]
  %s4 = inlined_call_operand.hbm [shape: bf16[3,128,128], index: 4, kind: input, shape index: {}]
  %s5 = inlined_call_operand.vmem [shape: f32[1,128], index: 5, kind: input, shape index: {}]
  %s6 = inlined_call_operand.vmem [shape: f32[1,128], index: 6, kind: input, shape index: {}]
  %s7 = inlined_call_operand.hbm [shape: bf16[64,128], index: 7, kind: input, shape index: {}]
  %s8 = inlined_call_operand.vmem [shape: f32[1,128], index: 8, kind: input, shape index: {}]
  %s9 = inlined_call_operand.vmem [shape: f32[1,128], index: 9, kind: input, shape index: {}]
  %s10 = inlined_call_operand.hbm [shape: f32[2,16,128], index: 10, kind: output, shape index: {}]
  %s11 = sld [smem:[#allocation0]]
  $region89: #{tpu_custom_call.1} parent=0
    _
  %s13 = ssub.s32 1, %s11
  %s14 = scalar_select 0, %s13, %s11
  $region1: #{tpu_custom_call.1} parent=0
    #allocation4 [shape = 'u8[16384]{0}', space=vmem, size = 0x4000, scoped, tag = 'input window, operand 0']
    #allocation5 [shape = 's32[2]{0}', space=sflag, size = 0x8, scoped, tag = 'scoped memory for tpu_custom_call.1']
    #allocation6 [shape = 's32[2]{0}', space=sflag, size = 0x8, scoped, tag = 'scoped memory for tpu_custom_call.1']
    #allocation7 [shape = 'u8[49152]{0}', space=vmem, size = 0xc000, scoped, tag = 'input window, operand 1, single buffered']
    #allocation8 [shape = 's32[1]{0}', space=sflag, size = 0x4, scoped, tag = 'scoped memory for tpu_custom_call.1']
    #allocation9 [shape = 'u8[98304]{0}', space=vmem, size = 0x18000, scoped, tag = 'input window, operand 4, single buffered']
    #allocation10 [shape = 'u8[16384]{0}', space=vmem, size = 0x4000, scoped, tag = 'input window, operand 7, single buffered']
    #allocation11 [shape = 's32[1]{0}', space=sflag, size = 0x4, scoped, tag = 'scoped memory for tpu_custom_call.1']
    #allocation12 [shape = 'u8[16384]{0}', space=vmem, size = 0x4000, scoped, tag = 'output window, operand 0']
    %15 = vsyncpa [#allocation5], 0
    %s16 = scalar_lea.sflag [#allocation5], 1
    %17 = vsyncpa %s16, 0
    %18 = vsyncpa [#allocation8], 0
    %19 = vsyncpa [#allocation11], 0
    %20 = vsyncpa [#allocation6], 0
    %s21 = scalar_lea.sflag [#allocation6], 1
    %22 = vsyncpa %s21, 0
    loop: start=0, step=1, limit=4
    $region2: #{tpu_custom_call.1} parent=1 // loop_pre_header
      _
    $region3: #{tpu_custom_call.1} parent=1 // loop_header
      %s24 = sphi 0, %s28
      %p25 = scmp.ge.s32.totalorder %s24, 4
      %s34 = sphi 0, %s36
      %s37 = sphi 0, %s34
      %s38 = sphi 0, %s37
      %s54 = sphi 0, %s38
      %s58 = sphi 0, %s58
      %s60 = sphi 0, %s58
      %s61 = sphi 0, %s60
      %s75 = sphi 0, %s61
      %s79 = sphi 0, %s79
      %s81 = sphi 0, %s79
      %s82 = sphi 0, %s81
      %s96 = sphi 0, %s82
      %s100 = sphi 0, %s100
      %s102 = sphi 0, %s100
      %s103 = sphi 0, %s102
      %s117 = sphi 0, %s103
      %s121 = sphi 0, %s121
      %s123 = sphi 0, %s121
      %s124 = sphi 0, %s123
      %s138 = sphi 0, %s124
      %s142 = sphi 0, %s142
      %s144 = sphi 0, %s142
      %s145 = sphi 0, %s144
      %s159 = sphi 0, %s145
      %s163 = sphi 0, %s163
      %s165 = sphi 0, %s163
      %s166 = sphi 0, %s165
      %s180 = sphi 0, %s166
      %s184 = sphi 0, %s184
      %s186 = sphi 0, %s184
      %s187 = sphi 0, %s186
      %s201 = sphi 0, %s187
      %s205 = sphi 0, %s205
      %s207 = sphi 0, %s205
      %s208 = sphi 0, %s207
      %s222 = sphi 0, %s208
      %s226 = sphi 0, %s226
      %s228 = sphi 0, %s226
      %s229 = sphi 0, %s228
      %s243 = sphi 0, %s229
      %s249 = sphi 0, %s251
      %s252 = sphi 0, %s249
      %s253 = sphi 0, %s252
      %s269 = sphi 0, %s253
    $region4: #{tpu_custom_call.1} parent=1 // loop_header_branch
      %27 = sbr.rel (%p25) target = $region8
    $region5: #{tpu_custom_call.1} parent=1 // loop_body
      %s29 = ssub.s32 %s24, 1
      %s30 = ssub.s32 %s24, 2
      %s31 = sadd.s32 %s24, 1
      %s32 = ssub.s32 %s24, %s31
      %p33 = scmp.eq.s32.totalorder %s32, 0
      %s35 = sadd.s32 %s34, 1
      %s36 = scalar_select %p33, %s34, %s35
      %p39 = pneg %p33
      %p40 = scmp.eq.s32.totalorder %s24, 1
      %p41 = por %p39, %p40
      %p42 = scmp.ne.s32.totalorder %s34, %s37
      %p43 = scmp.eq.s32.totalorder %s24, 0
      %p44 = por %p42, %p43
      %p45 = scmp.ne.s32.totalorder %s34, %s37
      %p46 = scmp.eq.s32.totalorder %s29, 1
      %p47 = por %p45, %p46
      %p48 = scmp.ne.s32.totalorder %s37, %s38
      %p49 = scmp.eq.s32.totalorder %s29, 0
      %p50 = por %p48, %p49
      %p51 = scmp.ne.s32.totalorder %s37, %s38
      %p52 = scmp.eq.s32.totalorder %s30, 1
      %p53 = por %p51, %p52
      %p55 = scmp.ne.s32.totalorder %s38, %s54
      %p56 = scmp.eq.s32.totalorder %s30, 0
      %p57 = por %p55, %p56
      %s59 = sadd.s32 %s58, 1
      %p62 = scmp.eq.s32.totalorder %s24, 1
      %p63 = scmp.ne.s32.totalorder %s58, %s60
      %p64 = scmp.eq.s32.totalorder %s24, 0
      %p65 = por %p63, %p64
      %p66 = scmp.ne.s32.totalorder %s58, %s60
      %p67 = scmp.eq.s32.totalorder %s29, 1
      %p68 = por %p66, %p67
      %p69 = scmp.ne.s32.totalorder %s60, %s61
      %p70 = scmp.eq.s32.totalorder %s29, 0
      %p71 = por %p69, %p70
      %p72 = scmp.ne.s32.totalorder %s60, %s61
      %p73 = scmp.eq.s32.totalorder %s30, 1
      %p74 = por %p72, %p73
      %p76 = scmp.ne.s32.totalorder %s61, %s75
      %p77 = scmp.eq.s32.totalorder %s30, 0
      %p78 = por %p76, %p77
      %s80 = sadd.s32 %s79, 1
      %p83 = scmp.eq.s32.totalorder %s24, 1
      %p84 = scmp.ne.s32.totalorder %s79, %s81
      %p85 = scmp.eq.s32.totalorder %s24, 0
      %p86 = por %p84, %p85
      %p87 = scmp.ne.s32.totalorder %s79, %s81
      %p88 = scmp.eq.s32.totalorder %s29, 1
      %p89 = por %p87, %p88
      %p90 = scmp.ne.s32.totalorder %s81, %s82
      %p91 = scmp.eq.s32.totalorder %s29, 0
      %p92 = por %p90, %p91
      %p93 = scmp.ne.s32.totalorder %s81, %s82
      %p94 = scmp.eq.s32.totalorder %s30, 1
      %p95 = por %p93, %p94
      %p97 = scmp.ne.s32.totalorder %s82, %s96
      %p98 = scmp.eq.s32.totalorder %s30, 0
      %p99 = por %p97, %p98
      %s101 = sadd.s32 %s100, 1
      %p104 = scmp.eq.s32.totalorder %s24, 1
      %p105 = scmp.ne.s32.totalorder %s100, %s102
      %p106 = scmp.eq.s32.totalorder %s24, 0
      %p107 = por %p105, %p106
      %p108 = scmp.ne.s32.totalorder %s100, %s102
      %p109 = scmp.eq.s32.totalorder %s29, 1
      %p110 = por %p108, %p109
      %p111 = scmp.ne.s32.totalorder %s102, %s103
      %p112 = scmp.eq.s32.totalorder %s29, 0
      %p113 = por %p111, %p112
      %p114 = scmp.ne.s32.totalorder %s102, %s103
      %p115 = scmp.eq.s32.totalorder %s30, 1
      %p116 = por %p114, %p115
      %p118 = scmp.ne.s32.totalorder %s103, %s117
      %p119 = scmp.eq.s32.totalorder %s30, 0
      %p120 = por %p118, %p119
      %s122 = sadd.s32 %s121, 1
      %p125 = scmp.eq.s32.totalorder %s24, 1
      %p126 = scmp.ne.s32.totalorder %s121, %s123
      %p127 = scmp.eq.s32.totalorder %s24, 0
      %p128 = por %p126, %p127
      %p129 = scmp.ne.s32.totalorder %s121, %s123
      %p130 = scmp.eq.s32.totalorder %s29, 1
      %p131 = por %p129, %p130
      %p132 = scmp.ne.s32.totalorder %s123, %s124
      %p133 = scmp.eq.s32.totalorder %s29, 0
      %p134 = por %p132, %p133
      %p135 = scmp.ne.s32.totalorder %s123, %s124
      %p136 = scmp.eq.s32.totalorder %s30, 1
      %p137 = por %p135, %p136
      %p139 = scmp.ne.s32.totalorder %s124, %s138
      %p140 = scmp.eq.s32.totalorder %s30, 0
      %p141 = por %p139, %p140
      %s143 = sadd.s32 %s142, 1
      %p146 = scmp.eq.s32.totalorder %s24, 1
      %p147 = scmp.ne.s32.totalorder %s142, %s144
      %p148 = scmp.eq.s32.totalorder %s24, 0
      %p149 = por %p147, %p148
      %p150 = scmp.ne.s32.totalorder %s142, %s144
      %p151 = scmp.eq.s32.totalorder %s29, 1
      %p152 = por %p150, %p151
      %p153 = scmp.ne.s32.totalorder %s144, %s145
      %p154 = scmp.eq.s32.totalorder %s29, 0
      %p155 = por %p153, %p154
      %p156 = scmp.ne.s32.totalorder %s144, %s145
      %p157 = scmp.eq.s32.totalorder %s30, 1
      %p158 = por %p156, %p157
      %p160 = scmp.ne.s32.totalorder %s145, %s159
      %p161 = scmp.eq.s32.totalorder %s30, 0
      %p162 = por %p160, %p161
      %s164 = sadd.s32 %s163, 1
      %p167 = scmp.eq.s32.totalorder %s24, 1
      %p168 = scmp.ne.s32.totalorder %s163, %s165
      %p169 = scmp.eq.s32.totalorder %s24, 0
      %p170 = por %p168, %p169
      %p171 = scmp.ne.s32.totalorder %s163, %s165
      %p172 = scmp.eq.s32.totalorder %s29, 1
      %p173 = por %p171, %p172
      %p174 = scmp.ne.s32.totalorder %s165, %s166
      %p175 = scmp.eq.s32.totalorder %s29, 0
      %p176 = por %p174, %p175
      %p177 = scmp.ne.s32.totalorder %s165, %s166
      %p178 = scmp.eq.s32.totalorder %s30, 1
      %p179 = por %p177, %p178
      %p181 = scmp.ne.s32.totalorder %s166, %s180
      %p182 = scmp.eq.s32.totalorder %s30, 0
      %p183 = por %p181, %p182
      %s185 = sadd.s32 %s184, 1
      %p188 = scmp.eq.s32.totalorder %s24, 1
      %p189 = scmp.ne.s32.totalorder %s184, %s186
      %p190 = scmp.eq.s32.totalorder %s24, 0
      %p191 = por %p189, %p190
      %p192 = scmp.ne.s32.totalorder %s184, %s186
      %p193 = scmp.eq.s32.totalorder %s29, 1
      %p194 = por %p192, %p193
      %p195 = scmp.ne.s32.totalorder %s186, %s187
      %p196 = scmp.eq.s32.totalorder %s29, 0
      %p197 = por %p195, %p196
      %p198 = scmp.ne.s32.totalorder %s186, %s187
      %p199 = scmp.eq.s32.totalorder %s30, 1
      %p200 = por %p198, %p199
      %p202 = scmp.ne.s32.totalorder %s187, %s201
      %p203 = scmp.eq.s32.totalorder %s30, 0
      %p204 = por %p202, %p203
      %s206 = sadd.s32 %s205, 1
      %p209 = scmp.eq.s32.totalorder %s24, 1
      %p210 = scmp.ne.s32.totalorder %s205, %s207
      %p211 = scmp.eq.s32.totalorder %s24, 0
      %p212 = por %p210, %p211
      %p213 = scmp.ne.s32.totalorder %s205, %s207
      %p214 = scmp.eq.s32.totalorder %s29, 1
      %p215 = por %p213, %p214
      %p216 = scmp.ne.s32.totalorder %s207, %s208
      %p217 = scmp.eq.s32.totalorder %s29, 0
      %p218 = por %p216, %p217
      %p219 = scmp.ne.s32.totalorder %s207, %s208
      %p220 = scmp.eq.s32.totalorder %s30, 1
      %p221 = por %p219, %p220
      %p223 = scmp.ne.s32.totalorder %s208, %s222
      %p224 = scmp.eq.s32.totalorder %s30, 0
      %p225 = por %p223, %p224
      %s227 = sadd.s32 %s226, 1
      %p230 = scmp.eq.s32.totalorder %s24, 1
      %p231 = scmp.ne.s32.totalorder %s226, %s228
      %p232 = scmp.eq.s32.totalorder %s24, 0
      %p233 = por %p231, %p232
      %p234 = scmp.ne.s32.totalorder %s226, %s228
      %p235 = scmp.eq.s32.totalorder %s29, 1
      %p236 = por %p234, %p235
      %p237 = scmp.ne.s32.totalorder %s228, %s229
      %p238 = scmp.eq.s32.totalorder %s29, 0
      %p239 = por %p237, %p238
      %p240 = scmp.ne.s32.totalorder %s228, %s229
      %p241 = scmp.eq.s32.totalorder %s30, 1
      %p242 = por %p240, %p241
      %p244 = scmp.ne.s32.totalorder %s229, %s243
      %p245 = scmp.eq.s32.totalorder %s30, 0
      %p246 = por %p244, %p245
      %s247 = ssub.s32 %s24, %s31
      %p248 = scmp.eq.s32.totalorder %s247, 0
      %s250 = sadd.s32 %s249, 1
      %s251 = scalar_select %p248, %s249, %s250
      %p254 = pneg %p248
      %p255 = scmp.eq.s32.totalorder %s24, 1
      %p256 = por %p254, %p255
      %p257 = scmp.ne.s32.totalorder %s249, %s252
      %p258 = scmp.eq.s32.totalorder %s24, 0
      %p259 = por %p257, %p258
      %p260 = scmp.ne.s32.totalorder %s249, %s252
      %p261 = scmp.eq.s32.totalorder %s29, 1
      %p262 = por %p260, %p261
      %p263 = scmp.ne.s32.totalorder %s252, %s253
      %p264 = scmp.eq.s32.totalorder %s29, 0
      %p265 = por %p263, %p264
      %p266 = scmp.ne.s32.totalorder %s252, %s253
      %p267 = scmp.eq.s32.totalorder %s30, 1
      %p268 = por %p266, %p267
      %p270 = scmp.ne.s32.totalorder %s253, %s269
      %p271 = scmp.eq.s32.totalorder %s30, 0
      %p272 = por %p270, %p271
      %p273 = scmp.le.s32.totalorder 1, %s24
      %p274 = scmp.lt.s32.totalorder %s24, 3
      %p275 = pnand %p273, %p274
      %p276 = pneg %p275
      // Predicated region
      $region9: #{tpu_custom_call.1} parent=5 // pred_check
        _
      $region10: #{tpu_custom_call.1} parent=5 // pred_check_branch
        %278 = sbr.rel (%p275) target = $region12
      $region11: #{tpu_custom_call.1} parent=5 // pred_region
        %s279 = ssub.s32 %s24, 1
        // Predicated region
        $region13: #{tpu_custom_call.1} parent=11 // pred_check
          %p280 = pneg %p71
        $region14: #{tpu_custom_call.1} parent=11 // pred_check_branch
          %282 = sbr.rel (%p280) target = $region16
        $region15: #{tpu_custom_call.1} parent=11 // pred_region
          %s284 = ssub.s32 1536, 1536
          %285 = vsyncadd [#allocation8], %s284
          %s286 = sshll.u32 [#allocation7], 4
          %s287 = int_to_ptr.vmem [resolvable:$true] %s286
          %292 = dma.hbm_to_vmem [thread:$0]  %s1, 1536, %s287, [#allocation8], 64, 64, 4
        $region16: #{tpu_custom_call.1} parent=11 // pred_fallthru
          _
        // Predicated region
        $region17: #{tpu_custom_call.1} parent=11 // pred_check
          %p293 = pneg %p92
        $region18: #{tpu_custom_call.1} parent=11 // pred_check_branch
          %295 = sbr.rel (%p293) target = $region20
        $region19: #{tpu_custom_call.1} parent=11 // pred_region
          _
        $region20: #{tpu_custom_call.1} parent=11 // pred_fallthru
          _
        // Predicated region
        $region21: #{tpu_custom_call.1} parent=11 // pred_check
          %p296 = pneg %p113
        $region22: #{tpu_custom_call.1} parent=11 // pred_check_branch
          %298 = sbr.rel (%p296) target = $region24
        $region23: #{tpu_custom_call.1} parent=11 // pred_region
          _
        $region24: #{tpu_custom_call.1} parent=11 // pred_fallthru
          _
        // Predicated region
        $region25: #{tpu_custom_call.1} parent=11 // pred_check
          %p299 = pneg %p134
        $region26: #{tpu_custom_call.1} parent=11 // pred_check_branch
          %301 = sbr.rel (%p299) target = $region28
        $region27: #{tpu_custom_call.1} parent=11 // pred_region
          %s303 = ssub.s32 3072, 3072
          %304 = vsyncadd [#allocation8], %s303
          %s305 = sshll.u32 [#allocation9], 4
          %s306 = int_to_ptr.vmem [resolvable:$true] %s305
          %311 = dma.hbm_to_vmem [thread:$0]  %s4, 3072, %s306, [#allocation8], 64, 64, 4
        $region28: #{tpu_custom_call.1} parent=11 // pred_fallthru
          _
        // Predicated region
        $region29: #{tpu_custom_call.1} parent=11 // pred_check
          %p312 = pneg %p155
        $region30: #{tpu_custom_call.1} parent=11 // pred_check_branch
          %314 = sbr.rel (%p312) target = $region32
        $region31: #{tpu_custom_call.1} parent=11 // pred_region
          _
        $region32: #{tpu_custom_call.1} parent=11 // pred_fallthru
          _
        // Predicated region
        $region33: #{tpu_custom_call.1} parent=11 // pred_check
          %p315 = pneg %p176
        $region34: #{tpu_custom_call.1} parent=11 // pred_check_branch
          %317 = sbr.rel (%p315) target = $region36
        $region35: #{tpu_custom_call.1} parent=11 // pred_region
          _
        $region36: #{tpu_custom_call.1} parent=11 // pred_fallthru
          _
        // Predicated region
        $region37: #{tpu_custom_call.1} parent=11 // pred_check
          %p318 = pneg %p197
        $region38: #{tpu_custom_call.1} parent=11 // pred_check_branch
          %320 = sbr.rel (%p318) target = $region40
        $region39: #{tpu_custom_call.1} parent=11 // pred_region
          %s322 = ssub.s32 512, 512
          %323 = vsyncadd [#allocation11], %s322
          %s324 = sshll.u32 [#allocation10], 4
          %s325 = int_to_ptr.vmem [resolvable:$true] %s324
          %330 = dma.hbm_to_vmem [thread:$0]  %s7, 512, %s325, [#allocation11], 64, 64, 4
        $region40: #{tpu_custom_call.1} parent=11 // pred_fallthru
          _
        // Predicated region
        $region41: #{tpu_custom_call.1} parent=11 // pred_check
          %p331 = pneg %p218
        $region42: #{tpu_custom_call.1} parent=11 // pred_check_branch
          %333 = sbr.rel (%p331) target = $region44
        $region43: #{tpu_custom_call.1} parent=11 // pred_region
          _
        $region44: #{tpu_custom_call.1} parent=11 // pred_fallthru
          _
        // Predicated region
        $region45: #{tpu_custom_call.1} parent=11 // pred_check
          %p334 = pneg %p239
        $region46: #{tpu_custom_call.1} parent=11 // pred_check_branch
          %336 = sbr.rel (%p334) target = $region48
        $region47: #{tpu_custom_call.1} parent=11 // pred_region
          _
        $region48: #{tpu_custom_call.1} parent=11 // pred_fallthru
          _
      $region12: #{tpu_custom_call.1} parent=5 // pred_fallthru
        _
      %p337 = scmp.lt.s32.totalorder %s24, 2
      // Predicated region
      $region49: #{tpu_custom_call.1} parent=5 // pred_check
        %p338 = pneg %p337
      $region50: #{tpu_custom_call.1} parent=5 // pred_check_branch
        %340 = sbr.rel (%p338) target = $region52
      $region51: #{tpu_custom_call.1} parent=5 // pred_region
        // Predicated region
        $region53: #{tpu_custom_call.1} parent=51 // pred_check
          %p341 = pneg %p44
        $region54: #{tpu_custom_call.1} parent=51 // pred_check_branch
          %343 = sbr.rel (%p341) target = $region56
        $region55: #{tpu_custom_call.1} parent=51 // pred_region
          %s344 = sand.u32 %s34, 1
          %s345 = scalar_lea.sflag [#allocation5], %s344
          %s346 = sand.u32 %s34, 1
          %s347 = smul.addr %s346, 16
          %s348 = scalar_lea.vmem [#allocation4], %s347
          %s350 = ssub.s32 256, 256
          %351 = vsyncadd %s345, %s350
          %s352 = smul.addr %s24, 2
          %s353 = smul.addr %s352, 128
          %s354 = scalar_lea.hbm %s0, %s353
          %s355 = sshll.u32 %s348, 4
          %s356 = int_to_ptr.vmem [resolvable:$true] %s355
          %361 = dma.hbm_to_vmem [thread:$0]  %s354, 256, %s356, %s345, 128, 128, 8
        $region56: #{tpu_custom_call.1} parent=51 // pred_fallthru
          _
      $region52: #{tpu_custom_call.1} parent=5 // pred_fallthru
        _
      %p362 = scmp.le.s32.totalorder 1, %s24
      %p363 = scmp.lt.s32.totalorder %s24, 3
      %p364 = pnand %p362, %p363
      %p365 = pneg %p364
      // Predicated region
      $region57: #{tpu_custom_call.1} parent=5 // pred_check
        _
      $region58: #{tpu_custom_call.1} parent=5 // pred_check_branch
        %367 = sbr.rel (%p364) target = $region60
      $region59: #{tpu_custom_call.1} parent=5 // pred_region
        %s368 = ssub.s32 %s24, 1
        %s369 = sand.u32 %s37, 1
        %s370 = scalar_lea.sflag [#allocation5], %s369
        %s371 = sand.u32 %s37, 1
        %s372 = smul.addr %s371, 16
        %s373 = scalar_lea.vmem [#allocation4], %s372
        // Predicated region
        $region61: #{tpu_custom_call.1} parent=59 // pred_check
          %p374 = pneg %p50
        $region62: #{tpu_custom_call.1} parent=59 // pred_check_branch
          %376 = sbr.rel (%p374) target = $region64
        $region63: #{tpu_custom_call.1} parent=59 // pred_region
          %377 = dma.done %s370, 256
        $region64: #{tpu_custom_call.1} parent=59 // pred_fallthru
          _
        // Predicated region
        $region65: #{tpu_custom_call.1} parent=59 // pred_check
          %p378 = pneg %p71
        $region66: #{tpu_custom_call.1} parent=59 // pred_check_branch
          %380 = sbr.rel (%p378) target = $region68
        $region67: #{tpu_custom_call.1} parent=59 // pred_region
          %381 = dma.done [#allocation8], 1536
        $region68: #{tpu_custom_call.1} parent=59 // pred_fallthru
          _
        // Predicated region
        $region69: #{tpu_custom_call.1} parent=59 // pred_check
          %p382 = pneg %p134
        $region70: #{tpu_custom_call.1} parent=59 // pred_check_branch
          %384 = sbr.rel (%p382) target = $region72
        $region71: #{tpu_custom_call.1} parent=59 // pred_region
          %385 = dma.done [#allocation8], 3072
        $region72: #{tpu_custom_call.1} parent=59 // pred_fallthru
          _
        // Predicated region
        $region73: #{tpu_custom_call.1} parent=59 // pred_check
          %p386 = pneg %p197
        $region74: #{tpu_custom_call.1} parent=59 // pred_check_branch
          %388 = sbr.rel (%p386) target = $region76
        $region75: #{tpu_custom_call.1} parent=59 // pred_region
          %389 = dma.done [#allocation11], 512
        $region76: #{tpu_custom_call.1} parent=59 // pred_fallthru
          _
        %s390 = sand.u32 %s37, 1
        %s391 = scalar_lea.sflag [#allocation5], %s390
        %s392 = sand.u32 %s37, 1
        %s393 = smul.addr %s392, 16
        %s394 = scalar_lea.vmem [#allocation4], %s393
        %p395 = pneg %p50
        %p396 = pneg %p47
        %p397 = pneg %p71
        %p398 = pneg %p68
        %p399 = pneg %p92
        %p400 = pneg %p89
        %p401 = pneg %p113
        %p402 = pneg %p110
        %p403 = pneg %p134
        %p404 = pneg %p131
        %p405 = pneg %p155
        %p406 = pneg %p152
        %p407 = pneg %p176
        %p408 = pneg %p173
        %p409 = pneg %p197
        %p410 = pneg %p194
        %p411 = pneg %p218
        %p412 = pneg %p215
        %p413 = pneg %p239
        %p414 = pneg %p236
        %p415 = pneg %p265
        %p416 = pneg %p262
        %s417 = sand.u32 %s252, 1
        %s418 = scalar_lea.sflag [#allocation6], %s417
        %s419 = sand.u32 %s252, 1
        %s420 = smul.addr %s419, 16
        %s421 = scalar_lea.vmem [#allocation12], %s420
        %v423 = vld [vmem:[%s373] sm:$0xff]
        %v424 = vld [vmem:[%s373 + $0x8] sm:$0xff]
        %vm425 = vcmask 516096
        %vm426 = vsmask.f32 256
        %vm427 = vmand %vm425, %vm426
        %v428 = vld [vmem:[#allocation2] sm:$0x1]
        %v429 = vsel %vm427, 0, %v428
        %430 = vst [vmem:[#allocation2] sm:$0x1] %v429
        %vm431 = vsmask.f32 7938
        %vm432 = vmand %vm425, %vm431
        %v433 = vld [vmem:[#allocation2 + $0x8] sm:$0x1]
        %v434 = vsel %vm432, 0, %v433
        %435 = vst [vmem:[#allocation2 + $0x8] sm:$0x1] %v434
        %v436 = vpack.c.bf16 %v424, %v423
        %v438 = vunpack.c.l.b16 %v436
        %v439 = vunpack.c.h.b16 %v436
        %v440 = vpack.c.b16 %v438, %v438
        %v441 = vpack.c.b16 %v439, %v439
        %vm442 = vsmask.f32 4368
        %vm443 = vmor %vm426, %vm442
        %v445 = vshrl.u32 %v440, 16
        %v447 = vrot.slane %v445, 7
        %v448 = vshll.u32 %v440, 16
        %v450 = vor.u32 %v447, %v448
        %v451 = vrot.slane %v447, 4
        %v453 = vshrl.u32 %v441, 16
        %v455 = vrot.slane %v453, 7
        %v456 = vshll.u32 %v441, 16
        %v458 = vor.u32 %v455, %v456
        %v459 = vsel %vm443, %v451, %v458
        %v460 = vrot.slane %v455, 4
        %vm464 = vcmask 519168
        %vm465 = vmand %vm464, %vm431
        %v466 = vld [vmem:[#allocation2] sm:$0xf]
        %v467 = vsel %vm465, %v450, %v466
        %468 = vst [vmem:[#allocation2] sm:$0xf] %v467
        %vm469 = vcmask 519168
        %470 = vst.msk [vmem:[#allocation2 + $0x4] sm:$0xf] %vm469, %v459
        %v471 = vld [vmem:[#allocation2 + $0x8] sm:$0x1]
        %v472 = vsel %vm427, %v460, %v471
        %473 = vst [vmem:[#allocation2 + $0x8] sm:$0x1] %v472
        %v474 = vld [vmem:[#allocation2] sm:$0xf]
        %v475 = vld [vmem:[#allocation2 + $0x4] sm:$0xf]
        %v476 = vld [vmem:[#allocation2 + $0x8] sm:$0x1]
        %v477 = vld [vmem:[#allocation7] sm:$0xf]
        %v478 = vld [vmem:[#allocation7 + $0x4] sm:$0xf]
        %v479 = vld [vmem:[#allocation7 + $0x8] sm:$0xf]
        %v480 = vld [vmem:[#allocation7 + $0xc] sm:$0xf]
        %v481 = vld [vmem:[#allocation7 + $0x10] sm:$0xf]
        %v482 = vld [vmem:[#allocation7 + $0x14] sm:$0xf]
        %v483 = vld [vmem:[#allocation7 + $0x18] sm:$0xf]
        %v484 = vld [vmem:[#allocation7 + $0x1c] sm:$0xf]
        %s485 = scalar_lea.vmem [#allocation7], 32
        %v486 = vld [vmem:[%s485] sm:$0xf]
        %v487 = vld [vmem:[%s485 + $0x4] sm:$0xf]
        %v488 = vld [vmem:[%s485 + $0x8] sm:$0xf]
        %v489 = vld [vmem:[%s485 + $0xc] sm:$0xf]
        %v490 = vld [vmem:[%s485 + $0x10] sm:$0xf]
        %v491 = vld [vmem:[%s485 + $0x14] sm:$0xf]
        %v492 = vld [vmem:[%s485 + $0x18] sm:$0xf]
        %v493 = vld [vmem:[%s485 + $0x1c] sm:$0xf]
        %v497 = vunpack.c.l.b16 %v474
        %v498 = vunpack.c.l.b16 %v475
        %v499 = vunpack.c.l.b16 %v476
        %v500 = vpack.c.b16 %v498, %v497
        %v501 = vpack.c.b16 %v499, %v499
        %vm502 = vsmask.f32 7424
        %v504 = vshrl.u32 %v500, 16
        %v506 = vshll.u32 %v500, 16
        %v508 = vrot.slane %v506, 1
        %v509 = vor.u32 %v504, %v508
        %v511 = vshll.u32 %v501, 16
        %v513 = vrot.slane %v511, 1
        %v514 = vsel %vm502, %v509, %v513
        %v523 = vunpack.c.l.b16 %v486
        %v524 = vunpack.c.l.b16 %v487
        %v525 = vunpack.c.l.b16 %v488
        %v526 = vunpack.c.l.b16 %v489
        %v527 = vunpack.c.l.b16 %v490
        %v528 = vunpack.c.l.b16 %v491
        %v529 = vunpack.c.l.b16 %v492
        %v530 = vunpack.c.l.b16 %v493
        %v531 = vpack.c.b16 %v524, %v523
        %v532 = vpack.c.b16 %v526, %v525
        %v533 = vpack.c.b16 %v528, %v527
        %v534 = vpack.c.b16 %v530, %v529
        %vm539 = vcmask 523264
        %v541 = vsel %vm539, %v514, 0
        %543 = vmatprep.subr.bf16.mxu0 0
        %544 = vmatpush1.bf16.msra.mxu0 %v531
        %545 = vmatprep.subr.bf16.mxu0 0
        %546 = vmatpush1.bf16.msra.mxu0 %v532
        %547 = vmatprep.subr.bf16.mxu0 0
        %548 = vmatpush1.bf16.msra.mxu0 %v533
        %549 = vmatprep.subr.bf16.mxu0 0
        %550 = vmatpush1.bf16.msra.mxu0 %v534
        %551 = vmatprep.subr.bf16.mxu0 0
        %552 = vmatpush1.bf16.msra.mxu0 0
        %553 = vmatprep.subr.bf16.mxu0 0
        %554 = vmatpush1.bf16.msra.mxu0 0
        %555 = vmatprep.subr.bf16.mxu0 0
        %556 = vmatpush1.bf16.msra.mxu0 0
        %557 = vmatprep.subr.bf16.mxu0 0
        %558 = vmatpush1.bf16.msra.mxu0 0
        %559 = vmatprep.subr.bf16.mxu0 0
        %560 = vmatpush1.bf16.msra.mxu0 0
        %561 = vmatprep.subr.bf16.mxu0 0
        %562 = vmatpush1.bf16.msra.mxu0 0
        %563 = vmatprep.subr.bf16.mxu0 0
        %564 = vmatpush1.bf16.msra.mxu0 0
        %565 = vmatprep.subr.bf16.mxu0 0
        %566 = vmatpush1.bf16.msra.mxu0 0
        %567 = vmatprep.subr.bf16.mxu0 0
        %568 = vmatpush1.bf16.msra.mxu0 0
        %569 = vmatprep.subr.bf16.mxu0 0
        %570 = vmatpush1.bf16.msra.mxu0 0
        %571 = vmatprep.subr.bf16.mxu0 0
        %572 = vmatpush1.bf16.msra.mxu0 0
        %573 = vmatprep.subr.bf16.mxu0 0
        %574 = vmatpush1.bf16.msra.mxu0 0
        %575 = vmatprep.mubr.bf16.mxu0 0
        %576 = vmatmul.mubr.bf16.gmra.mrb[0].mxu0 %v541
        %v577 = vpop.f32.mrb[0].mxu0
        %v578 = vadd.f32 0.0, %v577
        %v579 = vpop.f32.mrb[0].mxu0
        %v580 = vpop.f32.mrb[0].mxu0
        %v581 = vadd.f32 0.0, %v580
        %v582 = vpop.f32.mrb[0].mxu0
        %583 = vdwg.mxu0
        %v592 = vunpack.c.l.b16 %v477
        %v593 = vunpack.c.l.b16 %v478
        %v594 = vunpack.c.l.b16 %v479
        %v595 = vunpack.c.l.b16 %v480
        %v596 = vunpack.c.l.b16 %v481
        %v597 = vunpack.c.l.b16 %v482
        %v598 = vunpack.c.l.b16 %v483
        %v599 = vunpack.c.l.b16 %v484
        %v600 = vpack.c.b16 %v593, %v592
        %v601 = vpack.c.b16 %v595, %v594
        %v602 = vpack.c.b16 %v597, %v596
        %v603 = vpack.c.b16 %v599, %v598
        %v608 = vsel %vm539, %v500, 0
        %610 = vmatprep.subr.bf16.mxu0 0
        %611 = vmatpush1.bf16.msra.mxu0 %v600
        %612 = vmatprep.subr.bf16.mxu0 0
        %613 = vmatpush1.bf16.msra.mxu0 %v601
        %614 = vmatprep.subr.bf16.mxu0 0
        %615 = vmatpush1.bf16.msra.mxu0 %v602
        %616 = vmatprep.subr.bf16.mxu0 0
        %617 = vmatpush1.bf16.msra.mxu0 %v603
        %618 = vmatprep.subr.bf16.mxu0 0
        %619 = vmatpush1.bf16.msra.mxu0 0
        %620 = vmatprep.subr.bf16.mxu0 0
        %621 = vmatpush1.bf16.msra.mxu0 0
        %622 = vmatprep.subr.bf16.mxu0 0
        %623 = vmatpush1.bf16.msra.mxu0 0
        %624 = vmatprep.subr.bf16.mxu0 0
        %625 = vmatpush1.bf16.msra.mxu0 0
        %626 = vmatprep.subr.bf16.mxu0 0
        %627 = vmatpush1.bf16.msra.mxu0 0
        %628 = vmatprep.subr.bf16.mxu0 0
        %629 = vmatpush1.bf16.msra.mxu0 0
        %630 = vmatprep.subr.bf16.mxu0 0
        %631 = vmatpush1.bf16.msra.mxu0 0
        %632 = vmatprep.subr.bf16.mxu0 0
        %633 = vmatpush1.bf16.msra.mxu0 0
        %634 = vmatprep.subr.bf16.mxu0 0
        %635 = vmatpush1.bf16.msra.mxu0 0
        %636 = vmatprep.subr.bf16.mxu0 0
        %637 = vmatpush1.bf16.msra.mxu0 0
        %638 = vmatprep.subr.bf16.mxu0 0
        %639 = vmatpush1.bf16.msra.mxu0 0
        %640 = vmatprep.subr.bf16.mxu0 0
        %641 = vmatpush1.bf16.msra.mxu0 0
        %642 = vmatprep.mubr.bf16.mxu0 0
        %643 = vmatmul.mubr.bf16.gmra.mrb[0].mxu0 %v608
        %v644 = vpop.f32.mrb[0].mxu0
        %v645 = vadd.f32 %v578, %v644
        %v646 = vpop.f32.mrb[0].mxu0
        %v647 = vpop.f32.mrb[0].mxu0
        %v648 = vadd.f32 %v581, %v647
        %v649 = vpop.f32.mrb[0].mxu0
        %650 = vdwg.mxu0
        %s651 = scalar_lea.vmem [#allocation7], 64
        %v652 = vld [vmem:[%s651] sm:$0xf]
        %v653 = vld [vmem:[%s651 + $0x4] sm:$0xf]
        %v654 = vld [vmem:[%s651 + $0x8] sm:$0xf]
        %v655 = vld [vmem:[%s651 + $0xc] sm:$0xf]
        %v656 = vld [vmem:[%s651 + $0x10] sm:$0xf]
        %v657 = vld [vmem:[%s651 + $0x14] sm:$0xf]
        %v658 = vld [vmem:[%s651 + $0x18] sm:$0xf]
        %v659 = vld [vmem:[%s651 + $0x1c] sm:$0xf]
        %vm660 = vcmask 1046528
        %v661 = vrot.slane %v500, 1
        %v662 = vrot.slane %v501, 1
        %v663 = vsel %vm660, %v661, %v662
        %v672 = vunpack.c.l.b16 %v652
        %v673 = vunpack.c.l.b16 %v653
        %v674 = vunpack.c.l.b16 %v654
        %v675 = vunpack.c.l.b16 %v655
        %v676 = vunpack.c.l.b16 %v656
        %v677 = vunpack.c.l.b16 %v657
        %v678 = vunpack.c.l.b16 %v658
        %v679 = vunpack.c.l.b16 %v659
        %v680 = vpack.c.b16 %v673, %v672
        %v681 = vpack.c.b16 %v675, %v674
        %v682 = vpack.c.b16 %v677, %v676
        %v683 = vpack.c.b16 %v679, %v678
        %v689 = vsel %vm539, %v663, 0
        %691 = vmatprep.subr.bf16.mxu0 0
        %692 = vmatpush1.bf16.msra.mxu0 %v680
        %693 = vmatprep.subr.bf16.mxu0 0
        %694 = vmatpush1.bf16.msra.mxu0 %v681
        %695 = vmatprep.subr.bf16.mxu0 0
        %696 = vmatpush1.bf16.msra.mxu0 %v682
        %697 = vmatprep.subr.bf16.mxu0 0
        %698 = vmatpush1.bf16.msra.mxu0 %v683
        %699 = vmatprep.subr.bf16.mxu0 0
        %700 = vmatpush1.bf16.msra.mxu0 0
        %701 = vmatprep.subr.bf16.mxu0 0
        %702 = vmatpush1.bf16.msra.mxu0 0
        %703 = vmatprep.subr.bf16.mxu0 0
        %704 = vmatpush1.bf16.msra.mxu0 0
        %705 = vmatprep.subr.bf16.mxu0 0
        %706 = vmatpush1.bf16.msra.mxu0 0
        %707 = vmatprep.subr.bf16.mxu0 0
        %708 = vmatpush1.bf16.msra.mxu0 0
        %709 = vmatprep.subr.bf16.mxu0 0
        %710 = vmatpush1.bf16.msra.mxu0 0
        %711 = vmatprep.subr.bf16.mxu0 0
        %712 = vmatpush1.bf16.msra.mxu0 0
        %713 = vmatprep.subr.bf16.mxu0 0
        %714 = vmatpush1.bf16.msra.mxu0 0
        %715 = vmatprep.subr.bf16.mxu0 0
        %716 = vmatpush1.bf16.msra.mxu0 0
        %717 = vmatprep.subr.bf16.mxu0 0
        %718 = vmatpush1.bf16.msra.mxu0 0
        %719 = vmatprep.subr.bf16.mxu0 0
        %720 = vmatpush1.bf16.msra.mxu0 0
        %721 = vmatprep.subr.bf16.mxu0 0
        %722 = vmatpush1.bf16.msra.mxu0 0
        %723 = vmatprep.mubr.bf16.mxu0 0
        %724 = vmatmul.mubr.bf16.gmra.mrb[0].mxu0 %v689
        %v725 = vpop.f32.mrb[0].mxu0
        %v726 = vadd.f32 0.0, %v725
        %v727 = vpop.f32.mrb[0].mxu0
        %v728 = vpop.f32.mrb[0].mxu0
        %v729 = vadd.f32 0.0, %v728
        %v730 = vpop.f32.mrb[0].mxu0
        %731 = vdwg.mxu0
        %v732 = vadd.f32 %v645, %v726
        %v733 = vadd.f32 %v648, %v729
        %v734 = vld [vmem:[%s2] sm:$0x1]
        %v736 = vlaneseq
        %v737 = vshrl.u32 %v736, 7
        %v738 = vsub.s32 0, %v737
        %v739 = vrot.slane %v734, %v738
        %v741 = vmul.f32 %v732, %v739
        %v742 = vmul.f32 %v733, %v739
        %v743 = vld [vmem:[%s3] sm:$0x1]
        %v745 = vlaneseq
        %v746 = vshrl.u32 %v745, 7
        %v747 = vsub.s32 0, %v746
        %v748 = vrot.slane %v743, %v747
        %v750 = vadd.f32 %v741, %v748
        %v751 = vadd.f32 %v742, %v748
        %v752 = vmax.f32 %v750, 0.0
        %v753 = vmax.f32 %v751, 0.0
        %vm754 = vcmask 1040384
        %vm755 = vmand %vm754, %vm426
        %v756 = vld [vmem:[#allocation3] sm:$0x1]
        %v757 = vsel %vm755, 0, %v756
        %758 = vst [vmem:[#allocation3] sm:$0x1] %v757
        %vm759 = vmand %vm754, %vm431
        %v760 = vld [vmem:[#allocation3 + $0x8] sm:$0x1]
        %v761 = vsel %vm759, 0, %v760
        %762 = vst [vmem:[#allocation3 + $0x8] sm:$0x1] %v761
        %v763 = vpack.c.bf16 %v753, %v752
        %v765 = vunpack.c.l.b16 %v763
        %v766 = vunpack.c.h.b16 %v763
        %v767 = vpack.c.b16 %v765, %v765
        %v768 = vpack.c.b16 %v766, %v766
        %v770 = vshrl.u32 %v767, 16
        %v772 = vrot.slane %v770, 7
        %v773 = vshll.u32 %v767, 16
        %v775 = vor.u32 %v772, %v773
        %v776 = vrot.slane %v772, 4
        %v778 = vshrl.u32 %v768, 16
        %v780 = vrot.slane %v778, 7
        %v781 = vshll.u32 %v768, 16
        %v783 = vor.u32 %v780, %v781
        %v784 = vsel %vm443, %v776, %v783
        %v785 = vrot.slane %v780, 4
        %vm789 = vcmask 1043456
        %vm790 = vmand %vm789, %vm431
        %v791 = vld [vmem:[#allocation3] sm:$0xf]
        %v792 = vsel %vm790, %v775, %v791
        %793 = vst [vmem:[#allocation3] sm:$0xf] %v792
        %794 = vst [vmem:[#allocation3 + $0x4] sm:$0xf] %v784
        %v795 = vld [vmem:[#allocation3 + $0x8] sm:$0x1]
        %v796 = vsel %vm755, %v785, %v795
        %797 = vst [vmem:[#allocation3 + $0x8] sm:$0x1] %v796
        %v798 = vld [vmem:[#allocation3] sm:$0xf]
        %v799 = vld [vmem:[#allocation3 + $0x4] sm:$0xf]
        %v800 = vld [vmem:[#allocation3 + $0x8] sm:$0x1]
        %v801 = vld [vmem:[#allocation9] sm:$0xf]
        %v802 = vld [vmem:[#allocation9 + $0x4] sm:$0xf]
        %v803 = vld [vmem:[#allocation9 + $0x8] sm:$0xf]
        %v804 = vld [vmem:[#allocation9 + $0xc] sm:$0xf]
        %v805 = vld [vmem:[#allocation9 + $0x10] sm:$0xf]
        %v806 = vld [vmem:[#allocation9 + $0x14] sm:$0xf]
        %v807 = vld [vmem:[#allocation9 + $0x18] sm:$0xf]
        %v808 = vld [vmem:[#allocation9 + $0x1c] sm:$0xf]
        %v809 = vld [vmem:[#allocation9 + $0x20] sm:$0xf]
        %v810 = vld [vmem:[#allocation9 + $0x24] sm:$0xf]
        %v811 = vld [vmem:[#allocation9 + $0x28] sm:$0xf]
        %v812 = vld [vmem:[#allocation9 + $0x2c] sm:$0xf]
        %v813 = vld [vmem:[#allocation9 + $0x30] sm:$0xf]
        %v814 = vld [vmem:[#allocation9 + $0x34] sm:$0xf]
        %v815 = vld [vmem:[#allocation9 + $0x38] sm:$0xf]
        %v816 = vld [vmem:[#allocation9 + $0x3c] sm:$0xf]
        %s817 = scalar_lea.vmem [#allocation9], 64
        %v818 = vld [vmem:[%s817] sm:$0xf]
        %v819 = vld [vmem:[%s817 + $0x4] sm:$0xf]
        %v820 = vld [vmem:[%s817 + $0x8] sm:$0xf]
        %v821 = vld [vmem:[%s817 + $0xc] sm:$0xf]
        %v822 = vld [vmem:[%s817 + $0x10] sm:$0xf]
        %v823 = vld [vmem:[%s817 + $0x14] sm:$0xf]
        %v824 = vld [vmem:[%s817 + $0x18] sm:$0xf]
        %v825 = vld [vmem:[%s817 + $0x1c] sm:$0xf]
        %v826 = vld [vmem:[%s817 + $0x20] sm:$0xf]
        %v827 = vld [vmem:[%s817 + $0x24] sm:$0xf]
        %v828 = vld [vmem:[%s817 + $0x28] sm:$0xf]
        %v829 = vld [vmem:[%s817 + $0x2c] sm:$0xf]
        %v830 = vld [vmem:[%s817 + $0x30] sm:$0xf]
        %v831 = vld [vmem:[%s817 + $0x34] sm:$0xf]
        %v832 = vld [vmem:[%s817 + $0x38] sm:$0xf]
        %v833 = vld [vmem:[%s817 + $0x3c] sm:$0xf]
        %v837 = vunpack.c.l.b16 %v798
        %v838 = vunpack.c.l.b16 %v799
        %v839 = vunpack.c.l.b16 %v800
        %v840 = vpack.c.b16 %v838, %v837
        %v841 = vpack.c.b16 %v839, %v839
        %v843 = vshrl.u32 %v840, 16
        %v845 = vshll.u32 %v840, 16
        %v847 = vrot.slane %v845, 1
        %v848 = vor.u32 %v843, %v847
        %v850 = vshll.u32 %v841, 16
        %v852 = vrot.slane %v850, 1
        %v853 = vsel %vm502, %v848, %v852
        %v871 = vunpack.c.l.b16 %v818
        %v872 = vunpack.c.l.b16 %v819
        %v873 = vunpack.c.l.b16 %v820
        %v874 = vunpack.c.l.b16 %v821
        %v875 = vunpack.c.l.b16 %v822
        %v876 = vunpack.c.l.b16 %v823
        %v877 = vunpack.c.l.b16 %v824
        %v878 = vunpack.c.l.b16 %v825
        %v879 = vunpack.c.l.b16 %v826
        %v880 = vunpack.c.l.b16 %v827
        %v881 = vunpack.c.l.b16 %v828
        %v882 = vunpack.c.l.b16 %v829
        %v883 = vunpack.c.l.b16 %v830
        %v884 = vunpack.c.l.b16 %v831
        %v885 = vunpack.c.l.b16 %v832
        %v886 = vunpack.c.l.b16 %v833
        %v887 = vpack.c.b16 %v872, %v871
        %v888 = vpack.c.b16 %v874, %v873
        %v889 = vpack.c.b16 %v876, %v875
        %v890 = vpack.c.b16 %v878, %v877
        %v891 = vpack.c.b16 %v880, %v879
        %v892 = vpack.c.b16 %v882, %v881
        %v893 = vpack.c.b16 %v884, %v883
        %v894 = vpack.c.b16 %v886, %v885
        %903 = vmatprep.subr.bf16.mxu0 0
        %904 = vmatpush1.bf16.msra.mxu0 %v887
        %905 = vmatprep.subr.bf16.mxu0 0
        %906 = vmatpush1.bf16.msra.mxu0 %v888
        %907 = vmatprep.subr.bf16.mxu0 0
        %908 = vmatpush1.bf16.msra.mxu0 %v889
        %909 = vmatprep.subr.bf16.mxu0 0
        %910 = vmatpush1.bf16.msra.mxu0 %v890
        %911 = vmatprep.subr.bf16.mxu0 0
        %912 = vmatpush1.bf16.msra.mxu0 %v891
        %913 = vmatprep.subr.bf16.mxu0 0
        %914 = vmatpush1.bf16.msra.mxu0 %v892
        %915 = vmatprep.subr.bf16.mxu0 0
        %916 = vmatpush1.bf16.msra.mxu0 %v893
        %917 = vmatprep.subr.bf16.mxu0 0
        %918 = vmatpush1.bf16.msra.mxu0 %v894
        %919 = vmatprep.subr.bf16.mxu0 0
        %920 = vmatpush1.bf16.msra.mxu0 0
        %921 = vmatprep.subr.bf16.mxu0 0
        %922 = vmatpush1.bf16.msra.mxu0 0
        %923 = vmatprep.subr.bf16.mxu0 0
        %924 = vmatpush1.bf16.msra.mxu0 0
        %925 = vmatprep.subr.bf16.mxu0 0
        %926 = vmatpush1.bf16.msra.mxu0 0
        %927 = vmatprep.subr.bf16.mxu0 0
        %928 = vmatpush1.bf16.msra.mxu0 0
        %929 = vmatprep.subr.bf16.mxu0 0
        %930 = vmatpush1.bf16.msra.mxu0 0
        %931 = vmatprep.subr.bf16.mxu0 0
        %932 = vmatpush1.bf16.msra.mxu0 0
        %933 = vmatprep.subr.bf16.mxu0 0
        %934 = vmatpush1.bf16.msra.mxu0 0
        %935 = vmatprep.mubr.bf16.mxu0 0
        %936 = vmatmul.mubr.bf16.gmra.mrb[0].mxu0 %v853
        %v937 = vpop.f32.mrb[0].mxu0
        %v938 = vadd.f32 0.0, %v937
        %v939 = vpop.f32.mrb[0].mxu0
        %v940 = vpop.f32.mrb[0].mxu0
        %v941 = vadd.f32 0.0, %v940
        %v942 = vpop.f32.mrb[0].mxu0
        %943 = vdwg.mxu0
        %v961 = vunpack.c.l.b16 %v801
        %v962 = vunpack.c.l.b16 %v802
        %v963 = vunpack.c.l.b16 %v803
        %v964 = vunpack.c.l.b16 %v804
        %v965 = vunpack.c.l.b16 %v805
        %v966 = vunpack.c.l.b16 %v806
        %v967 = vunpack.c.l.b16 %v807
        %v968 = vunpack.c.l.b16 %v808
        %v969 = vunpack.c.l.b16 %v809
        %v970 = vunpack.c.l.b16 %v810
        %v971 = vunpack.c.l.b16 %v811
        %v972 = vunpack.c.l.b16 %v812
        %v973 = vunpack.c.l.b16 %v813
        %v974 = vunpack.c.l.b16 %v814
        %v975 = vunpack.c.l.b16 %v815
        %v976 = vunpack.c.l.b16 %v816
        %v977 = vpack.c.b16 %v962, %v961
        %v978 = vpack.c.b16 %v964, %v963
        %v979 = vpack.c.b16 %v966, %v965
        %v980 = vpack.c.b16 %v968, %v967
        %v981 = vpack.c.b16 %v970, %v969
        %v982 = vpack.c.b16 %v972, %v971
        %v983 = vpack.c.b16 %v974, %v973
        %v984 = vpack.c.b16 %v976, %v975
        %993 = vmatprep.subr.bf16.mxu0 0
        %994 = vmatpush1.bf16.msra.mxu0 %v977
        %995 = vmatprep.subr.bf16.mxu0 0
        %996 = vmatpush1.bf16.msra.mxu0 %v978
        %997 = vmatprep.subr.bf16.mxu0 0
        %998 = vmatpush1.bf16.msra.mxu0 %v979
        %999 = vmatprep.subr.bf16.mxu0 0
        %1000 = vmatpush1.bf16.msra.mxu0 %v980
        %1001 = vmatprep.subr.bf16.mxu0 0
        %1002 = vmatpush1.bf16.msra.mxu0 %v981
        %1003 = vmatprep.subr.bf16.mxu0 0
        %1004 = vmatpush1.bf16.msra.mxu0 %v982
        %1005 = vmatprep.subr.bf16.mxu0 0
        %1006 = vmatpush1.bf16.msra.mxu0 %v983
        %1007 = vmatprep.subr.bf16.mxu0 0
        %1008 = vmatpush1.bf16.msra.mxu0 %v984
        %1009 = vmatprep.subr.bf16.mxu0 0
        %1010 = vmatpush1.bf16.msra.mxu0 0
        %1011 = vmatprep.subr.bf16.mxu0 0
        %1012 = vmatpush1.bf16.msra.mxu0 0
        %1013 = vmatprep.subr.bf16.mxu0 0
        %1014 = vmatpush1.bf16.msra.mxu0 0
        %1015 = vmatprep.subr.bf16.mxu0 0
        %1016 = vmatpush1.bf16.msra.mxu0 0
        %1017 = vmatprep.subr.bf16.mxu0 0
        %1018 = vmatpush1.bf16.msra.mxu0 0
        %1019 = vmatprep.subr.bf16.mxu0 0
        %1020 = vmatpush1.bf16.msra.mxu0 0
        %1021 = vmatprep.subr.bf16.mxu0 0
        %1022 = vmatpush1.bf16.msra.mxu0 0
        %1023 = vmatprep.subr.bf16.mxu0 0
        %1024 = vmatpush1.bf16.msra.mxu0 0
        %1025 = vmatprep.mubr.bf16.mxu0 0
        %1026 = vmatmul.mubr.bf16.gmra.mrb[0].mxu0 %v840
        %v1027 = vpop.f32.mrb[0].mxu0
        %v1028 = vadd.f32 %v938, %v1027
        %v1029 = vpop.f32.mrb[0].mxu0
        %v1030 = vpop.f32.mrb[0].mxu0
        %v1031 = vadd.f32 %v941, %v1030
        %v1032 = vpop.f32.mrb[0].mxu0
        %1033 = vdwg.mxu0
        %s1034 = scalar_lea.vmem [#allocation9], 128
        %v1035 = vld [vmem:[%s1034] sm:$0xf]
        %v1036 = vld [vmem:[%s1034 + $0x4] sm:$0xf]
        %v1037 = vld [vmem:[%s1034 + $0x8] sm:$0xf]
        %v1038 = vld [vmem:[%s1034 + $0xc] sm:$0xf]
        %v1039 = vld [vmem:[%s1034 + $0x10] sm:$0xf]
        %v1040 = vld [vmem:[%s1034 + $0x14] sm:$0xf]
        %v1041 = vld [vmem:[%s1034 + $0x18] sm:$0xf]
        %v1042 = vld [vmem:[%s1034 + $0x1c] sm:$0xf]
        %v1043 = vld [vmem:[%s1034 + $0x20] sm:$0xf]
        %v1044 = vld [vmem:[%s1034 + $0x24] sm:$0xf]
        %v1045 = vld [vmem:[%s1034 + $0x28] sm:$0xf]
        %v1046 = vld [vmem:[%s1034 + $0x2c] sm:$0xf]
        %v1047 = vld [vmem:[%s1034 + $0x30] sm:$0xf]
        %v1048 = vld [vmem:[%s1034 + $0x34] sm:$0xf]
        %v1049 = vld [vmem:[%s1034 + $0x38] sm:$0xf]
        %v1050 = vld [vmem:[%s1034 + $0x3c] sm:$0xf]
        %v1051 = vrot.slane %v840, 1
        %v1052 = vrot.slane %v841, 1
        %v1053 = vsel %vm660, %v1051, %v1052
        %v1071 = vunpack.c.l.b16 %v1035
        %v1072 = vunpack.c.l.b16 %v1036
        %v1073 = vunpack.c.l.b16 %v1037
        %v1074 = vunpack.c.l.b16 %v1038
        %v1075 = vunpack.c.l.b16 %v1039
        %v1076 = vunpack.c.l.b16 %v1040
        %v1077 = vunpack.c.l.b16 %v1041
        %v1078 = vunpack.c.l.b16 %v1042
        %v1079 = vunpack.c.l.b16 %v1043
        %v1080 = vunpack.c.l.b16 %v1044
        %v1081 = vunpack.c.l.b16 %v1045
        %v1082 = vunpack.c.l.b16 %v1046
        %v1083 = vunpack.c.l.b16 %v1047
        %v1084 = vunpack.c.l.b16 %v1048
        %v1085 = vunpack.c.l.b16 %v1049
        %v1086 = vunpack.c.l.b16 %v1050
        %v1087 = vpack.c.b16 %v1072, %v1071
        %v1088 = vpack.c.b16 %v1074, %v1073
        %v1089 = vpack.c.b16 %v1076, %v1075
        %v1090 = vpack.c.b16 %v1078, %v1077
        %v1091 = vpack.c.b16 %v1080, %v1079
        %v1092 = vpack.c.b16 %v1082, %v1081
        %v1093 = vpack.c.b16 %v1084, %v1083
        %v1094 = vpack.c.b16 %v1086, %v1085
        %1103 = vmatprep.subr.bf16.mxu0 0
        %1104 = vmatpush1.bf16.msra.mxu0 %v1087
        %1105 = vmatprep.subr.bf16.mxu0 0
        %1106 = vmatpush1.bf16.msra.mxu0 %v1088
        %1107 = vmatprep.subr.bf16.mxu0 0
        %1108 = vmatpush1.bf16.msra.mxu0 %v1089
        %1109 = vmatprep.subr.bf16.mxu0 0
        %1110 = vmatpush1.bf16.msra.mxu0 %v1090
        %1111 = vmatprep.subr.bf16.mxu0 0
        %1112 = vmatpush1.bf16.msra.mxu0 %v1091
        %1113 = vmatprep.subr.bf16.mxu0 0
        %1114 = vmatpush1.bf16.msra.mxu0 %v1092
        %1115 = vmatprep.subr.bf16.mxu0 0
        %1116 = vmatpush1.bf16.msra.mxu0 %v1093
        %1117 = vmatprep.subr.bf16.mxu0 0
        %1118 = vmatpush1.bf16.msra.mxu0 %v1094
        %1119 = vmatprep.subr.bf16.mxu0 0
        %1120 = vmatpush1.bf16.msra.mxu0 0
        %1121 = vmatprep.subr.bf16.mxu0 0
        %1122 = vmatpush1.bf16.msra.mxu0 0
        %1123 = vmatprep.subr.bf16.mxu0 0
        %1124 = vmatpush1.bf16.msra.mxu0 0
        %1125 = vmatprep.subr.bf16.mxu0 0
        %1126 = vmatpush1.bf16.msra.mxu0 0
        %1127 = vmatprep.subr.bf16.mxu0 0
        %1128 = vmatpush1.bf16.msra.mxu0 0
        %1129 = vmatprep.subr.bf16.mxu0 0
        %1130 = vmatpush1.bf16.msra.mxu0 0
        %1131 = vmatprep.subr.bf16.mxu0 0
        %1132 = vmatpush1.bf16.msra.mxu0 0
        %1133 = vmatprep.subr.bf16.mxu0 0
        %1134 = vmatpush1.bf16.msra.mxu0 0
        %1135 = vmatprep.mubr.bf16.mxu0 0
        %1136 = vmatmul.mubr.bf16.gmra.mrb[0].mxu0 %v1053
        %v1137 = vpop.f32.mrb[0].mxu0
        %v1138 = vadd.f32 0.0, %v1137
        %v1139 = vpop.f32.mrb[0].mxu0
        %v1140 = vpop.f32.mrb[0].mxu0
        %v1141 = vadd.f32 0.0, %v1140
        %v1142 = vpop.f32.mrb[0].mxu0
        %1143 = vdwg.mxu0
        %v1144 = vadd.f32 %v1028, %v1138
        %v1145 = vadd.f32 %v1031, %v1141
        %v1146 = vld [vmem:[%s5] sm:$0x1]
        %v1148 = vlaneseq
        %v1149 = vshrl.u32 %v1148, 7
        %v1150 = vsub.s32 0, %v1149
        %v1151 = vrot.slane %v1146, %v1150
        %v1153 = vmul.f32 %v1144, %v1151
        %v1154 = vmul.f32 %v1145, %v1151
        %v1155 = vld [vmem:[%s6] sm:$0x1]
        %v1157 = vlaneseq
        %v1158 = vshrl.u32 %v1157, 7
        %v1159 = vsub.s32 0, %v1158
        %v1160 = vrot.slane %v1155, %v1159
        %v1162 = vadd.f32 %v1153, %v1160
        %v1163 = vadd.f32 %v1154, %v1160
        %v1164 = vld [vmem:[#allocation10] sm:$0xf]
        %v1165 = vld [vmem:[#allocation10 + $0x4] sm:$0xf]
        %v1166 = vld [vmem:[#allocation10 + $0x8] sm:$0xf]
        %v1167 = vld [vmem:[#allocation10 + $0xc] sm:$0xf]
        %v1168 = vld [vmem:[#allocation10 + $0x10] sm:$0xf]
        %v1169 = vld [vmem:[#allocation10 + $0x14] sm:$0xf]
        %v1170 = vld [vmem:[#allocation10 + $0x18] sm:$0xf]
        %v1171 = vld [vmem:[#allocation10 + $0x1c] sm:$0xf]
        %v1180 = vunpack.c.l.b16 %v1164
        %v1181 = vunpack.c.l.b16 %v1165
        %v1182 = vunpack.c.l.b16 %v1166
        %v1183 = vunpack.c.l.b16 %v1167
        %v1184 = vunpack.c.l.b16 %v1168
        %v1185 = vunpack.c.l.b16 %v1169
        %v1186 = vunpack.c.l.b16 %v1170
        %v1187 = vunpack.c.l.b16 %v1171
        %v1188 = vpack.c.b16 %v1181, %v1180
        %v1189 = vpack.c.b16 %v1183, %v1182
        %v1190 = vpack.c.b16 %v1185, %v1184
        %v1191 = vpack.c.b16 %v1187, %v1186
        %1196 = vmatprep.subr.bf16.mxu0 0
        %1197 = vmatpush1.bf16.msra.mxu0 %v1188
        %1198 = vmatprep.subr.bf16.mxu0 0
        %1199 = vmatpush1.bf16.msra.mxu0 %v1189
        %1200 = vmatprep.subr.bf16.mxu0 0
        %1201 = vmatpush1.bf16.msra.mxu0 %v1190
        %1202 = vmatprep.subr.bf16.mxu0 0
        %1203 = vmatpush1.bf16.msra.mxu0 %v1191
        %1204 = vmatprep.subr.bf16.mxu0 0
        %1205 = vmatpush1.bf16.msra.mxu0 0
        %1206 = vmatprep.subr.bf16.mxu0 0
        %1207 = vmatpush1.bf16.msra.mxu0 0
        %1208 = vmatprep.subr.bf16.mxu0 0
        %1209 = vmatpush1.bf16.msra.mxu0 0
        %1210 = vmatprep.subr.bf16.mxu0 0
        %1211 = vmatpush1.bf16.msra.mxu0 0
        %1212 = vmatprep.subr.bf16.mxu0 0
        %1213 = vmatpush1.bf16.msra.mxu0 0
        %1214 = vmatprep.subr.bf16.mxu0 0
        %1215 = vmatpush1.bf16.msra.mxu0 0
        %1216 = vmatprep.subr.bf16.mxu0 0
        %1217 = vmatpush1.bf16.msra.mxu0 0
        %1218 = vmatprep.subr.bf16.mxu0 0
        %1219 = vmatpush1.bf16.msra.mxu0 0
        %1220 = vmatprep.subr.bf16.mxu0 0
        %1221 = vmatpush1.bf16.msra.mxu0 0
        %1222 = vmatprep.subr.bf16.mxu0 0
        %1223 = vmatpush1.bf16.msra.mxu0 0
        %1224 = vmatprep.subr.bf16.mxu0 0
        %1225 = vmatpush1.bf16.msra.mxu0 0
        %1226 = vmatprep.subr.bf16.mxu0 0
        %1227 = vmatpush1.bf16.msra.mxu0 0
        %1228 = vmatprep.mubr.bf16.mxu0 0
        %1229 = vmatmul.mubr.bf16.gmra.mrb[0].mxu0 %v541
        %v1230 = vpop.f32.mrb[0].mxu0
        %v1231 = vadd.f32 0.0, %v1230
        %v1232 = vpop.f32.mrb[0].mxu0
        %v1233 = vpop.f32.mrb[0].mxu0
        %v1234 = vadd.f32 0.0, %v1233
        %v1235 = vpop.f32.mrb[0].mxu0
        %1236 = vdwg.mxu0
        %v1237 = vld [vmem:[%s8] sm:$0x1]
        %v1239 = vlaneseq
        %v1240 = vshrl.u32 %v1239, 7
        %v1241 = vsub.s32 0, %v1240
        %v1242 = vrot.slane %v1237, %v1241
        %v1244 = vmul.f32 %v1231, %v1242
        %v1245 = vmul.f32 %v1234, %v1242
        %v1246 = vld [vmem:[%s9] sm:$0x1]
        %v1248 = vlaneseq
        %v1249 = vshrl.u32 %v1248, 7
        %v1250 = vsub.s32 0, %v1249
        %v1251 = vrot.slane %v1246, %v1250
        %v1253 = vadd.f32 %v1244, %v1251
        %v1254 = vadd.f32 %v1245, %v1251
        %v1255 = vadd.f32 %v1162, %v1253
        %v1256 = vadd.f32 %v1163, %v1254
        %v1257 = vmax.f32 %v1255, 0.0
        %v1258 = vmax.f32 %v1256, 0.0
        %1259 = vst [vmem:[%s421] sm:$0xff] %v1257
        %1260 = vst [vmem:[%s421 + $0x8] sm:$0xff] %v1258
        %s1261 = sand.u32 %s252, 1
        %s1262 = scalar_lea.sflag [#allocation6], %s1261
        %s1263 = sand.u32 %s252, 1
        %s1264 = smul.addr %s1263, 16
        %s1265 = scalar_lea.vmem [#allocation12], %s1264
        // Predicated region
        $region77: #{tpu_custom_call.1} parent=59 // pred_check
          %p1266 = pneg %p262
        $region78: #{tpu_custom_call.1} parent=59 // pred_check_branch
          %1268 = sbr.rel (%p1266) target = $region80
        $region79: #{tpu_custom_call.1} parent=59 // pred_region
          %s1270 = ssub.s32 256, 256
          %1271 = vsyncadd %s1262, %s1270
          %s1272 = smul.addr %s29, 2
          %s1273 = smul.addr %s1272, 128
          %s1274 = scalar_lea.hbm %s10, %s1273
          %s1275 = sshll.u32 %s1265, 4
          %s1276 = int_to_ptr.vmem [resolvable:$true] %s1275
          %1281 = dma.vmem_to_hbm [thread:$0]  %s1276, 256, %s1274, %s1262, 128, 128, 8
        $region80: #{tpu_custom_call.1} parent=59 // pred_fallthru
          _
      $region60: #{tpu_custom_call.1} parent=5 // pred_fallthru
        _
      %p1282 = scmp.le.s32.totalorder 2, %s24
      // Predicated region
      $region81: #{tpu_custom_call.1} parent=5 // pred_check
        %p1283 = pneg %p1282
      $region82: #{tpu_custom_call.1} parent=5 // pred_check_branch
        %1285 = sbr.rel (%p1283) target = $region84
      $region83: #{tpu_custom_call.1} parent=5 // pred_region
        %s1286 = ssub.s32 %s24, 2
        // Predicated region
        $region85: #{tpu_custom_call.1} parent=83 // pred_check
          %p1287 = pneg %p268
        $region86: #{tpu_custom_call.1} parent=83 // pred_check_branch
          %1289 = sbr.rel (%p1287) target = $region88
        $region87: #{tpu_custom_call.1} parent=83 // pred_region
          %s1290 = sand.u32 %s253, 1
          %s1291 = scalar_lea.sflag [#allocation6], %s1290
          %s1292 = sand.u32 %s253, 1
          %s1293 = smul.addr %s1292, 16
          %s1294 = scalar_lea.vmem [#allocation12], %s1293
          %1295 = dma.done %s1291, 256
        $region88: #{tpu_custom_call.1} parent=83 // pred_fallthru
          _
      $region84: #{tpu_custom_call.1} parent=5 // pred_fallthru
        _
    $region6: #{tpu_custom_call.1} parent=1 // loop_footer
      %s28 = sadd.s32 1, %s24
    $region7: #{tpu_custom_call.1} parent=1 // loop_footer_branch
      %23 = sbr.rel target = $region3
    $region8: #{tpu_custom_call.1} parent=1 // loop_exit
      _
    %1296 = vsyncpa [#allocation5], 1
    %s1297 = scalar_lea.sflag [#allocation5], 1
    %1298 = vsyncpa %s1297, 1
    %1299 = vsyncpa [#allocation8], 1
    %1300 = vsyncpa [#allocation11], 1
    %1301 = vsyncpa [#allocation6], 1
    %s1302 = scalar_lea.sflag [#allocation6], 1
    %1303 = vsyncpa %s1302, 1

</llo_original>
